<compile_context>
chip_gen: v7x
topology: tpu7x:2x2x1
jax: 0.10.0
libtpu: 0.0.40
codegen_flags: <defaults>
</compile_context>

<pallas_src>
import functools

import jax
import jax.numpy as jnp
from jax.experimental import pallas as pl
from jax.experimental.pallas import tpu as pltpu


# ---------------------------------------------------------------------------
# Generation-aware budgets.
# ---------------------------------------------------------------------------
def _vmem_capacity_bytes():
    try:
        cap = int(pltpu.get_tpu_info().vmem_capacity_bytes)
        if cap > 0:
            return cap
    except Exception:
        pass
    return 64 * 1024 * 1024  # conservative (v7x-sized) fallback


def _budgets():
    cap = _vmem_capacity_bytes()
    vmem_limit = min((cap * 3) // 4, 96 * 1024 * 1024)
    # Fused path holds double-buffered input AND output blocks plus f32 temps
    # and the (tiny) weights -> keep one block at <= limit/8.
    fused_limit = max(512 * 1024, vmem_limit // 8)
    chunk_budget = max(512 * 1024, vmem_limit // 8)
    return int(vmem_limit), int(fused_limit), int(chunk_budget)


# ---------------------------------------------------------------------------
# Shared in-kernel helpers (channels on sublanes throughout).
# ---------------------------------------------------------------------------
def _pack_columns(cols, n_rows):
    """Build (n_rows, len(cols)) f32 from a list of (n_rows, 1) columns.

    Uses only elementwise select + broadcast (robust lowering, no concatenate).
    """
    width = len(cols)
    idx = jax.lax.broadcasted_iota(jnp.int32, (n_rows, width), 1)
    out = jnp.zeros((n_rows, width), jnp.float32)
    for j, col in enumerate(cols):
        out = jnp.where(idx == j, col, out)
    return out


def _mlp_sigmoid_cols(pooled, w1_ref, b1_ref, w2_ref, b2_ref):
    """Shared CBAM MLP applied column-wise.

    pooled: (C, 2*nb) columns laid out as [avg_0..avg_{nb-1} | max_0..max_{nb-1}].
    Weights in PyTorch Linear layout: w1 (Ch, C), w2 (C, Ch); biases (Ch,1)/(C,1).
    Returns sigmoid(mlp(avg_b) + mlp(max_b)) as (C, nb).
    (b2 is added once per branch, matching the PyTorch shared-MLP forward.)
    """
    h = jnp.dot(w1_ref[...], pooled, preferred_element_type=jnp.float32) + b1_ref[...]
    h = jnp.maximum(h, 0.0)
    y = jnp.dot(w2_ref[...], h, preferred_element_type=jnp.float32) + b2_ref[...]
    nb = pooled.shape[-1] // 2
    att = y[:, :nb] + y[:, nb:]
    return 1.0 / (1.0 + jnp.exp(-att))


# ---------------------------------------------------------------------------
# Path 1: fused single-pass kernel; nb batch rows per grid step.
# ---------------------------------------------------------------------------
def _fused_kernel(x_ref, w1_ref, b1_ref, w2_ref, b2_ref, o_ref, *, nb, inv_hw):
    c = x_ref.shape[1]
    xf = x_ref[...].astype(jnp.float32)                      # (nb, C, HW)
    avg = jnp.sum(xf, axis=-1, keepdims=True) * inv_hw       # (nb, C, 1)
    mx = jnp.max(xf, axis=-1, keepdims=True)                 # (nb, C, 1)
    cols = [avg[b] for b in range(nb)] + [mx[b] for b in range(nb)]
    pooled = _pack_columns(cols, c)                          # (C, 2*nb)
    scale = _mlp_sigmoid_cols(pooled, w1_ref, b1_ref, w2_ref, b2_ref)  # (C, nb)
    for b in range(nb):
        o_ref[b] = (xf[b] * scale[:, b:b + 1]).astype(o_ref.dtype)


# ---------------------------------------------------------------------------
# Path 2a: HW-chunked pooling + MLP -> per-batch (C, 1) channel scale.
# ---------------------------------------------------------------------------
def _pool_mlp_kernel(x_ref, w1_ref, b1_ref, w2_ref, b2_ref, scale_ref,
                     sum_acc, max_acc, *, hw, hw_blk, needs_mask):
    k = pl.program_id(1)

    @pl.when(k == 0)
    def _init():
        sum_acc[...] = jnp.zeros_like(sum_acc)
        max_acc[...] = jnp.full_like(max_acc, -jnp.inf)

    xf = x_ref[0].astype(jnp.float32)                        # (C, hw_blk)
    if needs_mask:
        lane = jax.lax.broadcasted_iota(jnp.int32, xf.shape, 1) + k * hw_blk
        valid = lane < hw
        xs = jnp.where(valid, xf, 0.0)
        xm = jnp.where(valid, xf, -jnp.inf)
    else:
        xs = xf
        xm = xf
    sum_acc[...] += jnp.sum(xs, axis=-1, keepdims=True)
    max_acc[...] = jnp.maximum(max_acc[...], jnp.max(xm, axis=-1, keepdims=True))

    @pl.when(k == pl.num_programs(1) - 1)
    def _finalize():
        avg = sum_acc[...] * (1.0 / hw)
        pooled = _pack_columns([avg, max_acc[...]], avg.shape[0])   # (C, 2)
        scale_ref[0] = _mlp_sigmoid_cols(pooled, w1_ref, b1_ref, w2_ref, b2_ref)


# ---------------------------------------------------------------------------
# Path 2b: lane-dense broadcast multiply (memory-bound, fully pipelined).
# ---------------------------------------------------------------------------
def _scale_mul_kernel(x_ref, scale_ref, o_ref):
    o_ref[...] = (x_ref[...].astype(jnp.float32) * scale_ref[...]).astype(o_ref.dtype)


# ---------------------------------------------------------------------------
# Wrapper.
# ---------------------------------------------------------------------------
def channel_gate(x_nchw, w1, b1, w2, b2, *, fused_limit_bytes=None,
                 chunk_bytes=None, donate_x=False):
    """ChannelGate forward.

    x_nchw: (N, C, H, W), any float dtype (output keeps the input dtype).
    Weights in PyTorch nn.Linear layout:
      w1: (C//r, C), b1: (C//r,)   -- Linear(C, C//r)
      w2: (C, C//r), b2: (C,)      -- Linear(C//r, C)
    donate_x=True aliases x into the output buffer (only if x is dead afterwards).
    """
    n, c, h, w = x_nchw.shape
    hw = h * w
    ch = w1.shape[0]
    dtype = x_nchw.dtype
    itemsize = jnp.dtype(dtype).itemsize

    vmem_limit, auto_fused_limit, auto_chunk = _budgets()
    fused_limit = auto_fused_limit if fused_limit_bytes is None else int(fused_limit_bytes)
    chunk_budget = auto_chunk if chunk_bytes is None else int(chunk_bytes)

    x3 = x_nchw.reshape(n, c, hw)                 # keep native dtype (I/O bytes!)
    w1f = w1.astype(jnp.float32)
    w2f = w2.astype(jnp.float32)
    b1c = b1.reshape(ch, 1).astype(jnp.float32)
    b2c = b2.reshape(c, 1).astype(jnp.float32)

    row_bytes = c * hw * itemsize
    io_alias = {0: 0} if donate_x else {}

    # Weight/bias specs: constant block index -> stay VMEM-resident across steps.
    def _weight_specs(idx_map):
        return [
            pl.BlockSpec((ch, c), idx_map),
            pl.BlockSpec((ch, 1), idx_map),
            pl.BlockSpec((c, ch), idx_map),
            pl.BlockSpec((c, 1), idx_map),
        ]

    if row_bytes <= fused_limit:
        # -------- fused single-pass path: grid over batch blocks only --------
        target_bytes = 1 << 20                                # ~1 MiB tiles
        nb_cap = -(-target_bytes // row_bytes)
        nb_cap = max(1, min(nb_cap, 8, n, fused_limit // row_bytes))
        nb = 1
        for cand in range(nb_cap, 0, -1):                    # prefer a divisor of n
            if n % cand == 0:
                nb = cand
                break
        if nb < max(1, nb_cap // 2):                          # else masked boundary
            nb = nb_cap
        n_blocks = -(-n // nb)

        out3 = pl.pallas_call(
            functools.partial(_fused_kernel, nb=nb, inv_hw=1.0 / hw),
            out_shape=jax.ShapeDtypeStruct((n, c, hw), dtype),
            grid_spec=pltpu.PrefetchScalarGridSpec(
                num_scalar_prefetch=0,
                grid=(n_blocks,),
                in_specs=[pl.BlockSpec((nb, c, hw), lambda i: (i, 0, 0))]
                + _weight_specs(lambda i: (0, 0)),
                out_specs=pl.BlockSpec((nb, c, hw), lambda i: (i, 0, 0)),
            ),
            compiler_params=pltpu.CompilerParams(
                dimension_semantics=("parallel",),
                vmem_limit_bytes=vmem_limit,
            ),
            cost_estimate=pl.CostEstimate(
                flops=int(4 * n * c * hw + 4 * n * c * ch),
                transcendentals=int(n * c),
                bytes_accessed=int(2 * n * c * hw * itemsize),
            ),
            input_output_aliases=io_alias,
        )(x3, w1f, b1c, w2f, b2c)
        return out3.reshape(n, c, h, w)

    # -------- chunked two-kernel path for rows too large for VMEM --------
    lanes_budget = max(128, chunk_budget // (c * itemsize))
    hw_blk = max(128, (lanes_budget // 128) * 128)            # lane-dense chunks
    hw_pad = -(-hw // 128) * 128
    hw_blk = min(hw_blk, hw_pad)
    k_steps = -(-hw // hw_blk)
    needs_mask = (hw % hw_blk) != 0

    scale = pl.pallas_call(
        functools.partial(_pool_mlp_kernel, hw=hw, hw_blk=hw_blk,
                          needs_mask=needs_mask),
        out_shape=jax.ShapeDtypeStruct((n, c, 1), jnp.float32),
        grid_spec=pltpu.PrefetchScalarGridSpec(
            num_scalar_prefetch=0,
            grid=(n, k_steps),
            in_specs=[pl.BlockSpec((1, c, hw_blk), lambda i, k: (i, 0, k))]
            + _weight_specs(lambda i, k: (0, 0)),
            out_specs=pl.BlockSpec((1, c, 1), lambda i, k: (i, 0, 0)),
            scratch_shapes=[
                pltpu.VMEM((c, 1), jnp.float32),  # running sum
                pltpu.VMEM((c, 1), jnp.float32),  # running max
            ],
        ),
        compiler_params=pltpu.CompilerParams(
            dimension_semantics=("parallel", "arbitrary"),
            vmem_limit_bytes=vmem_limit,
        ),
        cost_estimate=pl.CostEstimate(
            flops=int(2 * n * c * hw),
            transcendentals=int(n * c),
            bytes_accessed=int(n * c * hw * itemsize),
        ),
    )(x3, w1f, b1c, w2f, b2c)

    out3 = pl.pallas_call(
        _scale_mul_kernel,
        out_shape=jax.ShapeDtypeStruct((n, c, hw), dtype),
        grid_spec=pltpu.PrefetchScalarGridSpec(
            num_scalar_prefetch=0,
            grid=(n, k_steps),
            in_specs=[
                pl.BlockSpec((1, c, hw_blk), lambda i, k: (i, 0, k)),
                pl.BlockSpec((1, c, 1), lambda i, k: (i, 0, 0)),
            ],
            out_specs=pl.BlockSpec((1, c, hw_blk), lambda i, k: (i, 0, k)),
        ),
        compiler_params=pltpu.CompilerParams(
            dimension_semantics=("parallel", "parallel"),
            vmem_limit_bytes=vmem_limit,
        ),
        cost_estimate=pl.CostEstimate(
            flops=int(n * c * hw),
            transcendentals=0,
            bytes_accessed=int(2 * n * c * hw * itemsize),
        ),
        input_output_aliases=io_alias,
    )(x3, scale)
    return out3.reshape(n, c, h, w)


def reference_channel_gate(x, w1, b1, w2, b2):
    """Pure-JAX f32 reference matching the PyTorch forward."""
    xf = x.astype(jnp.float32)
    avg_p = jnp.mean(xf, axis=(2, 3))
    max_p = jnp.max(xf, axis=(2, 3))

    def mlp(p):
        return jnp.maximum(p @ w1.T + b1, 0.0) @ w2.T + b2

    att = mlp(avg_p) + mlp(max_p)
    scale = jax.nn.sigmoid(att)[:, :, None, None]
    return xf * scale


if __name__ == "__main__":
    key = jax.random.PRNGKey(0)

    def make_params(k, c, r):
        hidden = max(1, c // r)
        k1, k2, k3, k4 = jax.random.split(k, 4)
        w1 = jax.random.normal(k1, (hidden, c), dtype=jnp.float32) * 0.1
        b1 = jax.random.normal(k2, (hidden,), dtype=jnp.float32) * 0.1
        w2 = jax.random.normal(k3, (c, hidden), dtype=jnp.float32) * 0.1
        b2 = jax.random.normal(k4, (c,), dtype=jnp.float32) * 0.1
        return w1, b1, w2, b2

    # Test 1: fused path, nb-row batching with a masked batch-boundary block (N=9).
    kx, kp, key = jax.random.split(key, 3)
    N, C, H, W = 9, 32, 16, 16
    x = jax.random.normal(kx, (N, C, H, W), dtype=jnp.float32)
    w1, b1, w2, b2 = make_params(kp, C, 4)
    out = jax.block_until_ready(channel_gate(x, w1, b1, w2, b2))
    ref = reference_channel_gate(x, w1, b1, w2, b2)
    assert out.shape == x.shape and out.dtype == x.dtype
    assert jnp.allclose(out.astype(jnp.float32), ref, atol=2e-3, rtol=2e-3), \
        float(jnp.max(jnp.abs(out.astype(jnp.float32) - ref)))

    # Test 2: force the chunked path with a non-128-divisible H*W tail (masked).
    kx2, kp2, key = jax.random.split(key, 3)
    N2, C2, H2, W2 = 2, 16, 18, 20          # HW = 360 -> chunks of 128 + masked tail
    x2 = jax.random.normal(kx2, (N2, C2, H2, W2), dtype=jnp.float32)
    w1b, b1b, w2b, b2b = make_params(kp2, C2, 4)
    out2 = jax.block_until_ready(
        channel_gate(x2, w1b, b1b, w2b, b2b,
                     fused_limit_bytes=16 * 1024, chunk_bytes=8 * 1024))
    ref2 = reference_channel_gate(x2, w1b, b1b, w2b, b2b)
    assert out2.shape == x2.shape and out2.dtype == x2.dtype
    assert jnp.allclose(out2.astype(jnp.float32), ref2, atol=2e-3, rtol=2e-3), \
        float(jnp.max(jnp.abs(out2.astype(jnp.float32) - ref2)))

    # Test 3: native bf16 I/O on the fused path (output stays bf16).
    kx3, kp3, key = jax.random.split(key, 3)
    N3, C3, H3, W3 = 2, 64, 8, 8
    x3 = jax.random.normal(kx3, (N3, C3, H3, W3), dtype=jnp.float32).astype(jnp.bfloat16)
    w1c, b1c, w2c, b2c = make_params(kp3, C3, 16)
    out3 = jax.block_until_ready(channel_gate(x3, w1c, b1c, w2c, b2c))
    ref3 = reference_channel_gate(x3, w1c, b1c, w2c, b2c)
    assert out3.shape == x3.shape and out3.dtype == jnp.bfloat16
    assert jnp.allclose(out3.astype(jnp.float32), ref3, atol=3e-2, rtol=3e-2), \
        float(jnp.max(jnp.abs(out3.astype(jnp.float32) - ref3)))

    print("KERNEL_OK")
</pallas_src>

<mosaic_0001>
module attributes {stable_mosaic.version = 11 : i64} {
  func.func @_fused_kernel(%arg0: i32, %arg1: memref<8x32x256xf32, #tpu.memory_space<vmem>>, %arg2: memref<8x32xf32, #tpu.memory_space<vmem>>, %arg3: memref<8x1xf32, #tpu.memory_space<vmem>>, %arg4: memref<32x8xf32, #tpu.memory_space<vmem>>, %arg5: memref<32x1xf32, #tpu.memory_space<vmem>>, %arg6: memref<8x32x256xf32, #tpu.memory_space<vmem>>) attributes {dimension_semantics = [#tpu.dimension_semantics<parallel>], iteration_bounds = array<i64: 2>, scalar_prefetch = 0 : i64, scratch_operands = 0 : i64, tpu.core_type = #tpu.core_type<tc>, window_params = [{transform_indices = @transform_0, window_bounds = array<i64: 8, 32, 256>}, {pipeline_mode = #tpu.pipeline_mode<synchronous>, transform_indices = @transform_1, window_bounds = array<i64: 8, 32>}, {pipeline_mode = #tpu.pipeline_mode<synchronous>, transform_indices = @transform_2, window_bounds = array<i64: 8, 1>}, {pipeline_mode = #tpu.pipeline_mode<synchronous>, transform_indices = @transform_3, window_bounds = array<i64: 32, 8>}, {pipeline_mode = #tpu.pipeline_mode<synchronous>, transform_indices = @transform_4, window_bounds = array<i64: 32, 1>}, {transform_indices = @transform_5, window_bounds = array<i64: 8, 32, 256>}]} {
    %c0 = arith.constant 0 : index
    %c0_0 = arith.constant 0 : index
    %c0_1 = arith.constant 0 : index
    %0 = vector.load %arg1[%c0, %c0_0, %c0_1] : memref<8x32x256xf32, #tpu.memory_space<vmem>>, vector<8x32x256xf32>
    %cst = arith.constant dense<0.000000e+00> : vector<8x32xf32>
    %1 = vector.multi_reduction <add>, %0, %cst [2] : vector<8x32x256xf32> to vector<8x32xf32>
    %2 = vector.shape_cast %1 : vector<8x32xf32> to vector<8x32x1xf32>
    %cst_2 = arith.constant 3.906250e-03 : f32
    %3 = vector.broadcast %cst_2 : f32 to vector<8x32x1xf32>
    %4 = arith.mulf %2, %3 : vector<8x32x1xf32>
    %cst_3 = arith.constant dense<0xFF800000> : vector<8x32xf32>
    %5 = vector.multi_reduction <maximumf>, %0, %cst_3 [2] : vector<8x32x256xf32> to vector<8x32xf32>
    %6 = vector.shape_cast %5 : vector<8x32xf32> to vector<8x32x1xf32>
    %7 = vector.extract_strided_slice %4 {offsets = [0, 0, 0], sizes = [1, 32, 1], strides = [1, 1, 1]} : vector<8x32x1xf32> to vector<1x32x1xf32>
    %8 = vector.shape_cast %7 : vector<1x32x1xf32> to vector<32x1xf32>
    %9 = vector.extract_strided_slice %4 {offsets = [1, 0, 0], sizes = [1, 32, 1], strides = [1, 1, 1]} : vector<8x32x1xf32> to vector<1x32x1xf32>
    %10 = vector.shape_cast %9 : vector<1x32x1xf32> to vector<32x1xf32>
    %11 = vector.extract_strided_slice %4 {offsets = [2, 0, 0], sizes = [1, 32, 1], strides = [1, 1, 1]} : vector<8x32x1xf32> to vector<1x32x1xf32>
    %12 = vector.shape_cast %11 : vector<1x32x1xf32> to vector<32x1xf32>
    %13 = vector.extract_strided_slice %4 {offsets = [3, 0, 0], sizes = [1, 32, 1], strides = [1, 1, 1]} : vector<8x32x1xf32> to vector<1x32x1xf32>
    %14 = vector.shape_cast %13 : vector<1x32x1xf32> to vector<32x1xf32>
    %15 = vector.extract_strided_slice %4 {offsets = [4, 0, 0], sizes = [1, 32, 1], strides = [1, 1, 1]} : vector<8x32x1xf32> to vector<1x32x1xf32>
    %16 = vector.shape_cast %15 : vector<1x32x1xf32> to vector<32x1xf32>
    %17 = vector.extract_strided_slice %4 {offsets = [5, 0, 0], sizes = [1, 32, 1], strides = [1, 1, 1]} : vector<8x32x1xf32> to vector<1x32x1xf32>
    %18 = vector.shape_cast %17 : vector<1x32x1xf32> to vector<32x1xf32>
    %19 = vector.extract_strided_slice %4 {offsets = [6, 0, 0], sizes = [1, 32, 1], strides = [1, 1, 1]} : vector<8x32x1xf32> to vector<1x32x1xf32>
    %20 = vector.shape_cast %19 : vector<1x32x1xf32> to vector<32x1xf32>
    %21 = vector.extract_strided_slice %4 {offsets = [7, 0, 0], sizes = [1, 32, 1], strides = [1, 1, 1]} : vector<8x32x1xf32> to vector<1x32x1xf32>
    %22 = vector.shape_cast %21 : vector<1x32x1xf32> to vector<32x1xf32>
    %23 = vector.extract_strided_slice %6 {offsets = [0, 0, 0], sizes = [1, 32, 1], strides = [1, 1, 1]} : vector<8x32x1xf32> to vector<1x32x1xf32>
    %24 = vector.shape_cast %23 : vector<1x32x1xf32> to vector<32x1xf32>
    %25 = vector.extract_strided_slice %6 {offsets = [1, 0, 0], sizes = [1, 32, 1], strides = [1, 1, 1]} : vector<8x32x1xf32> to vector<1x32x1xf32>
    %26 = vector.shape_cast %25 : vector<1x32x1xf32> to vector<32x1xf32>
    %27 = vector.extract_strided_slice %6 {offsets = [2, 0, 0], sizes = [1, 32, 1], strides = [1, 1, 1]} : vector<8x32x1xf32> to vector<1x32x1xf32>
    %28 = vector.shape_cast %27 : vector<1x32x1xf32> to vector<32x1xf32>
    %29 = vector.extract_strided_slice %6 {offsets = [3, 0, 0], sizes = [1, 32, 1], strides = [1, 1, 1]} : vector<8x32x1xf32> to vector<1x32x1xf32>
    %30 = vector.shape_cast %29 : vector<1x32x1xf32> to vector<32x1xf32>
    %31 = vector.extract_strided_slice %6 {offsets = [4, 0, 0], sizes = [1, 32, 1], strides = [1, 1, 1]} : vector<8x32x1xf32> to vector<1x32x1xf32>
    %32 = vector.shape_cast %31 : vector<1x32x1xf32> to vector<32x1xf32>
    %33 = vector.extract_strided_slice %6 {offsets = [5, 0, 0], sizes = [1, 32, 1], strides = [1, 1, 1]} : vector<8x32x1xf32> to vector<1x32x1xf32>
    %34 = vector.shape_cast %33 : vector<1x32x1xf32> to vector<32x1xf32>
    %35 = vector.extract_strided_slice %6 {offsets = [6, 0, 0], sizes = [1, 32, 1], strides = [1, 1, 1]} : vector<8x32x1xf32> to vector<1x32x1xf32>
    %36 = vector.shape_cast %35 : vector<1x32x1xf32> to vector<32x1xf32>
    %37 = vector.extract_strided_slice %6 {offsets = [7, 0, 0], sizes = [1, 32, 1], strides = [1, 1, 1]} : vector<8x32x1xf32> to vector<1x32x1xf32>
    %38 = vector.shape_cast %37 : vector<1x32x1xf32> to vector<32x1xf32>
    %39 = tpu.iota {dimensions = array<i32: 1>} : vector<32x16xi32>
    %cst_4 = arith.constant 0.000000e+00 : f32
    %40 = vector.broadcast %cst_4 : f32 to vector<32x16xf32>
    %c0_i32 = arith.constant 0 : i32
    %41 = vector.broadcast %c0_i32 : i32 to vector<32x16xi32>
    %42 = arith.cmpi eq, %39, %41 : vector<32x16xi32>
    %43 = vector.shape_cast %8 : vector<32x1xf32> to vector<32x1xf32>
    %44 = vector.broadcast %43 : vector<32x1xf32> to vector<32x16xf32>
    %45 = arith.select %42, %44, %40 : vector<32x16xi1>, vector<32x16xf32>
    %c1_i32 = arith.constant 1 : i32
    %46 = vector.broadcast %c1_i32 : i32 to vector<32x16xi32>
    %47 = arith.cmpi eq, %39, %46 : vector<32x16xi32>
    %48 = vector.shape_cast %10 : vector<32x1xf32> to vector<32x1xf32>
    %49 = vector.broadcast %48 : vector<32x1xf32> to vector<32x16xf32>
    %50 = arith.select %47, %49, %45 : vector<32x16xi1>, vector<32x16xf32>
    %c2_i32 = arith.constant 2 : i32
    %51 = vector.broadcast %c2_i32 : i32 to vector<32x16xi32>
    %52 = arith.cmpi eq, %39, %51 : vector<32x16xi32>
    %53 = vector.shape_cast %12 : vector<32x1xf32> to vector<32x1xf32>
    %54 = vector.broadcast %53 : vector<32x1xf32> to vector<32x16xf32>
    %55 = arith.select %52, %54, %50 : vector<32x16xi1>, vector<32x16xf32>
    %c3_i32 = arith.constant 3 : i32
    %56 = vector.broadcast %c3_i32 : i32 to vector<32x16xi32>
    %57 = arith.cmpi eq, %39, %56 : vector<32x16xi32>
    %58 = vector.shape_cast %14 : vector<32x1xf32> to vector<32x1xf32>
    %59 = vector.broadcast %58 : vector<32x1xf32> to vector<32x16xf32>
    %60 = arith.select %57, %59, %55 : vector<32x16xi1>, vector<32x16xf32>
    %c4_i32 = arith.constant 4 : i32
    %61 = vector.broadcast %c4_i32 : i32 to vector<32x16xi32>
    %62 = arith.cmpi eq, %39, %61 : vector<32x16xi32>
    %63 = vector.shape_cast %16 : vector<32x1xf32> to vector<32x1xf32>
    %64 = vector.broadcast %63 : vector<32x1xf32> to vector<32x16xf32>
    %65 = arith.select %62, %64, %60 : vector<32x16xi1>, vector<32x16xf32>
    %c5_i32 = arith.constant 5 : i32
    %66 = vector.broadcast %c5_i32 : i32 to vector<32x16xi32>
    %67 = arith.cmpi eq, %39, %66 : vector<32x16xi32>
    %68 = vector.shape_cast %18 : vector<32x1xf32> to vector<32x1xf32>
    %69 = vector.broadcast %68 : vector<32x1xf32> to vector<32x16xf32>
    %70 = arith.select %67, %69, %65 : vector<32x16xi1>, vector<32x16xf32>
    %c6_i32 = arith.constant 6 : i32
    %71 = vector.broadcast %c6_i32 : i32 to vector<32x16xi32>
    %72 = arith.cmpi eq, %39, %71 : vector<32x16xi32>
    %73 = vector.shape_cast %20 : vector<32x1xf32> to vector<32x1xf32>
    %74 = vector.broadcast %73 : vector<32x1xf32> to vector<32x16xf32>
    %75 = arith.select %72, %74, %70 : vector<32x16xi1>, vector<32x16xf32>
    %c7_i32 = arith.constant 7 : i32
    %76 = vector.broadcast %c7_i32 : i32 to vector<32x16xi32>
    %77 = arith.cmpi eq, %39, %76 : vector<32x16xi32>
    %78 = vector.shape_cast %22 : vector<32x1xf32> to vector<32x1xf32>
    %79 = vector.broadcast %78 : vector<32x1xf32> to vector<32x16xf32>
    %80 = arith.select %77, %79, %75 : vector<32x16xi1>, vector<32x16xf32>
    %c8_i32 = arith.constant 8 : i32
    %81 = vector.broadcast %c8_i32 : i32 to vector<32x16xi32>
    %82 = arith.cmpi eq, %39, %81 : vector<32x16xi32>
    %83 = vector.shape_cast %24 : vector<32x1xf32> to vector<32x1xf32>
    %84 = vector.broadcast %83 : vector<32x1xf32> to vector<32x16xf32>
    %85 = arith.select %82, %84, %80 : vector<32x16xi1>, vector<32x16xf32>
    %c9_i32 = arith.constant 9 : i32
    %86 = vector.broadcast %c9_i32 : i32 to vector<32x16xi32>
    %87 = arith.cmpi eq, %39, %86 : vector<32x16xi32>
    %88 = vector.shape_cast %26 : vector<32x1xf32> to vector<32x1xf32>
    %89 = vector.broadcast %88 : vector<32x1xf32> to vector<32x16xf32>
    %90 = arith.select %87, %89, %85 : vector<32x16xi1>, vector<32x16xf32>
    %c10_i32 = arith.constant 10 : i32
    %91 = vector.broadcast %c10_i32 : i32 to vector<32x16xi32>
    %92 = arith.cmpi eq, %39, %91 : vector<32x16xi32>
    %93 = vector.shape_cast %28 : vector<32x1xf32> to vector<32x1xf32>
    %94 = vector.broadcast %93 : vector<32x1xf32> to vector<32x16xf32>
    %95 = arith.select %92, %94, %90 : vector<32x16xi1>, vector<32x16xf32>
    %c11_i32 = arith.constant 11 : i32
    %96 = vector.broadcast %c11_i32 : i32 to vector<32x16xi32>
    %97 = arith.cmpi eq, %39, %96 : vector<32x16xi32>
    %98 = vector.shape_cast %30 : vector<32x1xf32> to vector<32x1xf32>
    %99 = vector.broadcast %98 : vector<32x1xf32> to vector<32x16xf32>
    %100 = arith.select %97, %99, %95 : vector<32x16xi1>, vector<32x16xf32>
    %c12_i32 = arith.constant 12 : i32
    %101 = vector.broadcast %c12_i32 : i32 to vector<32x16xi32>
    %102 = arith.cmpi eq, %39, %101 : vector<32x16xi32>
    %103 = vector.shape_cast %32 : vector<32x1xf32> to vector<32x1xf32>
    %104 = vector.broadcast %103 : vector<32x1xf32> to vector<32x16xf32>
    %105 = arith.select %102, %104, %100 : vector<32x16xi1>, vector<32x16xf32>
    %c13_i32 = arith.constant 13 : i32
    %106 = vector.broadcast %c13_i32 : i32 to vector<32x16xi32>
    %107 = arith.cmpi eq, %39, %106 : vector<32x16xi32>
    %108 = vector.shape_cast %34 : vector<32x1xf32> to vector<32x1xf32>
    %109 = vector.broadcast %108 : vector<32x1xf32> to vector<32x16xf32>
    %110 = arith.select %107, %109, %105 : vector<32x16xi1>, vector<32x16xf32>
    %c14_i32 = arith.constant 14 : i32
    %111 = vector.broadcast %c14_i32 : i32 to vector<32x16xi32>
    %112 = arith.cmpi eq, %39, %111 : vector<32x16xi32>
    %113 = vector.shape_cast %36 : vector<32x1xf32> to vector<32x1xf32>
    %114 = vector.broadcast %113 : vector<32x1xf32> to vector<32x16xf32>
    %115 = arith.select %112, %114, %110 : vector<32x16xi1>, vector<32x16xf32>
    %c15_i32 = arith.constant 15 : i32
    %116 = vector.broadcast %c15_i32 : i32 to vector<32x16xi32>
    %117 = arith.cmpi eq, %39, %116 : vector<32x16xi32>
    %118 = vector.shape_cast %38 : vector<32x1xf32> to vector<32x1xf32>
    %119 = vector.broadcast %118 : vector<32x1xf32> to vector<32x16xf32>
    %120 = arith.select %117, %119, %115 : vector<32x16xi1>, vector<32x16xf32>
    %c0_5 = arith.constant 0 : index
    %c0_6 = arith.constant 0 : index
    %121 = vector.load %arg2[%c0_5, %c0_6] : memref<8x32xf32, #tpu.memory_space<vmem>>, vector<8x32xf32>
    %cst_7 = arith.constant dense<0.000000e+00> : vector<8x16xf32>
    %122 = tpu.matmul %121, %120, %cst_7 {dimension_numbers = #tpu.dot_dimension_numbers<[1], [0], [0], [1], [0, 0, 1, 1], [], []>} : vector<8x32xf32>, vector<32x16xf32>, vector<8x16xf32> -> vector<8x16xf32>
    %c0_8 = arith.constant 0 : index
    %c0_9 = arith.constant 0 : index
    %123 = vector.load %arg3[%c0_8, %c0_9] : memref<8x1xf32, #tpu.memory_space<vmem>>, vector<8x1xf32>
    %124 = vector.broadcast %123 : vector<8x1xf32> to vector<8x16xf32>
    %125 = arith.addf %122, %124 : vector<8x16xf32>
    %cst_10 = arith.constant 0.000000e+00 : f32
    %126 = vector.broadcast %cst_10 : f32 to vector<8x16xf32>
    %127 = arith.maximumf %125, %126 : vector<8x16xf32>
    %c0_11 = arith.constant 0 : index
    %c0_12 = arith.constant 0 : index
    %128 = vector.load %arg4[%c0_11, %c0_12] : memref<32x8xf32, #tpu.memory_space<vmem>>, vector<32x8xf32>
    %cst_13 = arith.constant dense<0.000000e+00> : vector<32x16xf32>
    %129 = tpu.matmul %128, %127, %cst_13 {dimension_numbers = #tpu.dot_dimension_numbers<[1], [0], [0], [1], [0, 0, 1, 1], [], []>} : vector<32x8xf32>, vector<8x16xf32>, vector<32x16xf32> -> vector<32x16xf32>
    %c0_14 = arith.constant 0 : index
    %c0_15 = arith.constant 0 : index
    %130 = vector.load %arg5[%c0_14, %c0_15] : memref<32x1xf32, #tpu.memory_space<vmem>>, vector<32x1xf32>
    %131 = vector.broadcast %130 : vector<32x1xf32> to vector<32x16xf32>
    %132 = arith.addf %129, %131 : vector<32x16xf32>
    %133 = vector.extract_strided_slice %132 {offsets = [0, 0], sizes = [32, 8], strides = [1, 1]} : vector<32x16xf32> to vector<32x8xf32>
    %134 = vector.extract_strided_slice %132 {offsets = [0, 8], sizes = [32, 8], strides = [1, 1]} : vector<32x16xf32> to vector<32x8xf32>
    %135 = arith.addf %133, %134 : vector<32x8xf32>
    %cst_16 = arith.constant 0.000000e+00 : f32
    %136 = vector.broadcast %cst_16 : f32 to vector<32x8xf32>
    %137 = arith.subf %136, %135 : vector<32x8xf32>
    %138 = math.exp %137 : vector<32x8xf32>
    %cst_17 = arith.constant 1.000000e+00 : f32
    %139 = vector.broadcast %cst_17 : f32 to vector<32x8xf32>
    %140 = arith.addf %139, %138 : vector<32x8xf32>
    %cst_18 = arith.constant 1.000000e+00 : f32
    %141 = vector.broadcast %cst_18 : f32 to vector<32x8xf32>
    %142 = arith.divf %141, %140 : vector<32x8xf32>
    %143 = vector.extract_strided_slice %0 {offsets = [0, 0, 0], sizes = [1, 32, 256], strides = [1, 1, 1]} : vector<8x32x256xf32> to vector<1x32x256xf32>
    %144 = vector.shape_cast %143 : vector<1x32x256xf32> to vector<32x256xf32>
    %145 = vector.extract_strided_slice %142 {offsets = [0, 0], sizes = [32, 1], strides = [1, 1]} : vector<32x8xf32> to vector<32x1xf32>
    %146 = vector.broadcast %145 : vector<32x1xf32> to vector<32x256xf32>
    %147 = arith.mulf %144, %146 : vector<32x256xf32>
    %c0_19 = arith.constant 0 : index
    %c0_20 = arith.constant 0 : index
    %c0_21 = arith.constant 0 : index
    %148 = vector.load %arg6[%c0_19, %c0_20, %c0_21] : memref<8x32x256xf32, #tpu.memory_space<vmem>>, vector<1x32x256xf32>
    %149 = vector.shape_cast %148 : vector<1x32x256xf32> to vector<32x256xf32>
    %150 = vector.shape_cast %147 : vector<32x256xf32> to vector<1x32x256xf32>
    tpu.vector_store %arg6[%c0_19, %c0_20, %c0_21], %150 {strides = array<i32>} : memref<8x32x256xf32, #tpu.memory_space<vmem>>, vector<1x32x256xf32>,
    %151 = vector.extract_strided_slice %0 {offsets = [1, 0, 0], sizes = [1, 32, 256], strides = [1, 1, 1]} : vector<8x32x256xf32> to vector<1x32x256xf32>
    %152 = vector.shape_cast %151 : vector<1x32x256xf32> to vector<32x256xf32>
    %153 = vector.extract_strided_slice %142 {offsets = [0, 1], sizes = [32, 1], strides = [1, 1]} : vector<32x8xf32> to vector<32x1xf32>
    %154 = vector.broadcast %153 : vector<32x1xf32> to vector<32x256xf32>
    %155 = arith.mulf %152, %154 : vector<32x256xf32>
    %c1 = arith.constant 1 : index
    %c0_22 = arith.constant 0 : index
    %c0_23 = arith.constant 0 : index
    %156 = vector.load %arg6[%c1, %c0_22, %c0_23] : memref<8x32x256xf32, #tpu.memory_space<vmem>>, vector<1x32x256xf32>
    %157 = vector.shape_cast %156 : vector<1x32x256xf32> to vector<32x256xf32>
    %158 = vector.shape_cast %155 : vector<32x256xf32> to vector<1x32x256xf32>
    tpu.vector_store %arg6[%c1, %c0_22, %c0_23], %158 {strides = array<i32>} : memref<8x32x256xf32, #tpu.memory_space<vmem>>, vector<1x32x256xf32>,
    %159 = vector.extract_strided_slice %0 {offsets = [2, 0, 0], sizes = [1, 32, 256], strides = [1, 1, 1]} : vector<8x32x256xf32> to vector<1x32x256xf32>
    %160 = vector.shape_cast %159 : vector<1x32x256xf32> to vector<32x256xf32>
    %161 = vector.extract_strided_slice %142 {offsets = [0, 2], sizes = [32, 1], strides = [1, 1]} : vector<32x8xf32> to vector<32x1xf32>
    %162 = vector.broadcast %161 : vector<32x1xf32> to vector<32x256xf32>
    %163 = arith.mulf %160, %162 : vector<32x256xf32>
    %c2 = arith.constant 2 : index
    %c0_24 = arith.constant 0 : index
    %c0_25 = arith.constant 0 : index
    %164 = vector.load %arg6[%c2, %c0_24, %c0_25] : memref<8x32x256xf32, #tpu.memory_space<vmem>>, vector<1x32x256xf32>
    %165 = vector.shape_cast %164 : vector<1x32x256xf32> to vector<32x256xf32>
    %166 = vector.shape_cast %163 : vector<32x256xf32> to vector<1x32x256xf32>
    tpu.vector_store %arg6[%c2, %c0_24, %c0_25], %166 {strides = array<i32>} : memref<8x32x256xf32, #tpu.memory_space<vmem>>, vector<1x32x256xf32>,
    %167 = vector.extract_strided_slice %0 {offsets = [3, 0, 0], sizes = [1, 32, 256], strides = [1, 1, 1]} : vector<8x32x256xf32> to vector<1x32x256xf32>
    %168 = vector.shape_cast %167 : vector<1x32x256xf32> to vector<32x256xf32>
    %169 = vector.extract_strided_slice %142 {offsets = [0, 3], sizes = [32, 1], strides = [1, 1]} : vector<32x8xf32> to vector<32x1xf32>
    %170 = vector.broadcast %169 : vector<32x1xf32> to vector<32x256xf32>
    %171 = arith.mulf %168, %170 : vector<32x256xf32>
    %c3 = arith.constant 3 : index
    %c0_26 = arith.constant 0 : index
    %c0_27 = arith.constant 0 : index
    %172 = vector.load %arg6[%c3, %c0_26, %c0_27] : memref<8x32x256xf32, #tpu.memory_space<vmem>>, vector<1x32x256xf32>
    %173 = vector.shape_cast %172 : vector<1x32x256xf32> to vector<32x256xf32>
    %174 = vector.shape_cast %171 : vector<32x256xf32> to vector<1x32x256xf32>
    tpu.vector_store %arg6[%c3, %c0_26, %c0_27], %174 {strides = array<i32>} : memref<8x32x256xf32, #tpu.memory_space<vmem>>, vector<1x32x256xf32>,
    %175 = vector.extract_strided_slice %0 {offsets = [4, 0, 0], sizes = [1, 32, 256], strides = [1, 1, 1]} : vector<8x32x256xf32> to vector<1x32x256xf32>
    %176 = vector.shape_cast %175 : vector<1x32x256xf32> to vector<32x256xf32>
    %177 = vector.extract_strided_slice %142 {offsets = [0, 4], sizes = [32, 1], strides = [1, 1]} : vector<32x8xf32> to vector<32x1xf32>
    %178 = vector.broadcast %177 : vector<32x1xf32> to vector<32x256xf32>
    %179 = arith.mulf %176, %178 : vector<32x256xf32>
    %c4 = arith.constant 4 : index
    %c0_28 = arith.constant 0 : index
    %c0_29 = arith.constant 0 : index
    %180 = vector.load %arg6[%c4, %c0_28, %c0_29] : memref<8x32x256xf32, #tpu.memory_space<vmem>>, vector<1x32x256xf32>
    %181 = vector.shape_cast %180 : vector<1x32x256xf32> to vector<32x256xf32>
    %182 = vector.shape_cast %179 : vector<32x256xf32> to vector<1x32x256xf32>
    tpu.vector_store %arg6[%c4, %c0_28, %c0_29], %182 {strides = array<i32>} : memref<8x32x256xf32, #tpu.memory_space<vmem>>, vector<1x32x256xf32>,
    %183 = vector.extract_strided_slice %0 {offsets = [5, 0, 0], sizes = [1, 32, 256], strides = [1, 1, 1]} : vector<8x32x256xf32> to vector<1x32x256xf32>
    %184 = vector.shape_cast %183 : vector<1x32x256xf32> to vector<32x256xf32>
    %185 = vector.extract_strided_slice %142 {offsets = [0, 5], sizes = [32, 1], strides = [1, 1]} : vector<32x8xf32> to vector<32x1xf32>
    %186 = vector.broadcast %185 : vector<32x1xf32> to vector<32x256xf32>
    %187 = arith.mulf %184, %186 : vector<32x256xf32>
    %c5 = arith.constant 5 : index
    %c0_30 = arith.constant 0 : index
    %c0_31 = arith.constant 0 : index
    %188 = vector.load %arg6[%c5, %c0_30, %c0_31] : memref<8x32x256xf32, #tpu.memory_space<vmem>>, vector<1x32x256xf32>
    %189 = vector.shape_cast %188 : vector<1x32x256xf32> to vector<32x256xf32>
    %190 = vector.shape_cast %187 : vector<32x256xf32> to vector<1x32x256xf32>
    tpu.vector_store %arg6[%c5, %c0_30, %c0_31], %190 {strides = array<i32>} : memref<8x32x256xf32, #tpu.memory_space<vmem>>, vector<1x32x256xf32>,
    %191 = vector.extract_strided_slice %0 {offsets = [6, 0, 0], sizes = [1, 32, 256], strides = [1, 1, 1]} : vector<8x32x256xf32> to vector<1x32x256xf32>
    %192 = vector.shape_cast %191 : vector<1x32x256xf32> to vector<32x256xf32>
    %193 = vector.extract_strided_slice %142 {offsets = [0, 6], sizes = [32, 1], strides = [1, 1]} : vector<32x8xf32> to vector<32x1xf32>
    %194 = vector.broadcast %193 : vector<32x1xf32> to vector<32x256xf32>
    %195 = arith.mulf %192, %194 : vector<32x256xf32>
    %c6 = arith.constant 6 : index
    %c0_32 = arith.constant 0 : index
    %c0_33 = arith.constant 0 : index
    %196 = vector.load %arg6[%c6, %c0_32, %c0_33] : memref<8x32x256xf32, #tpu.memory_space<vmem>>, vector<1x32x256xf32>
    %197 = vector.shape_cast %196 : vector<1x32x256xf32> to vector<32x256xf32>
    %198 = vector.shape_cast %195 : vector<32x256xf32> to vector<1x32x256xf32>
    tpu.vector_store %arg6[%c6, %c0_32, %c0_33], %198 {strides = array<i32>} : memref<8x32x256xf32, #tpu.memory_space<vmem>>, vector<1x32x256xf32>,
    %199 = vector.extract_strided_slice %0 {offsets = [7, 0, 0], sizes = [1, 32, 256], strides = [1, 1, 1]} : vector<8x32x256xf32> to vector<1x32x256xf32>
    %200 = vector.shape_cast %199 : vector<1x32x256xf32> to vector<32x256xf32>
    %201 = vector.extract_strided_slice %142 {offsets = [0, 7], sizes = [32, 1], strides = [1, 1]} : vector<32x8xf32> to vector<32x1xf32>
    %202 = vector.broadcast %201 : vector<32x1xf32> to vector<32x256xf32>
    %203 = arith.mulf %200, %202 : vector<32x256xf32>
    %c7 = arith.constant 7 : index
    %c0_34 = arith.constant 0 : index
    %c0_35 = arith.constant 0 : index
    %204 = vector.load %arg6[%c7, %c0_34, %c0_35] : memref<8x32x256xf32, #tpu.memory_space<vmem>>, vector<1x32x256xf32>
    %205 = vector.shape_cast %204 : vector<1x32x256xf32> to vector<32x256xf32>
    %206 = vector.shape_cast %203 : vector<32x256xf32> to vector<1x32x256xf32>
    tpu.vector_store %arg6[%c7, %c0_34, %c0_35], %206 {strides = array<i32>} : memref<8x32x256xf32, #tpu.memory_space<vmem>>, vector<1x32x256xf32>,
    return
  }
  func.func @transform_0(%arg0: i32) -> (i32, i32, i32) {
    %c0_i32 = arith.constant 0 : i32
    %c0_i32_0 = arith.constant 0 : i32
    %c0_i32_1 = arith.constant 0 : i32
    return %arg0, %c0_i32, %c0_i32_0 : i32, i32, i32
  }
  func.func @transform_1(%arg0: i32) -> (i32, i32) {
    %c0_i32 = arith.constant 0 : i32
    %c0_i32_0 = arith.constant 0 : i32
    %c0_i32_1 = arith.constant 0 : i32
    return %c0_i32, %c0_i32_0 : i32, i32
  }
  func.func @transform_2(%arg0: i32) -> (i32, i32) {
    %c0_i32 = arith.constant 0 : i32
    %c0_i32_0 = arith.constant 0 : i32
    %c0_i32_1 = arith.constant 0 : i32
    return %c0_i32, %c0_i32_0 : i32, i32
  }
  func.func @transform_3(%arg0: i32) -> (i32, i32) {
    %c0_i32 = arith.constant 0 : i32
    %c0_i32_0 = arith.constant 0 : i32
    %c0_i32_1 = arith.constant 0 : i32
    return %c0_i32, %c0_i32_0 : i32, i32
  }
  func.func @transform_4(%arg0: i32) -> (i32, i32) {
    %c0_i32 = arith.constant 0 : i32
    %c0_i32_0 = arith.constant 0 : i32
    %c0_i32_1 = arith.constant 0 : i32
    return %c0_i32, %c0_i32_0 : i32, i32
  }
  func.func @transform_5(%arg0: i32) -> (i32, i32, i32) {
    %c0_i32 = arith.constant 0 : i32
    %c0_i32_0 = arith.constant 0 : i32
    %c0_i32_1 = arith.constant 0 : i32
    return %arg0, %c0_i32, %c0_i32_0 : i32, i32, i32
  }
}

</mosaic_0001>

<llo_original>
// kernel: tpu_custom_call.1
$region0: #{tpu_custom_call.1}
  #allocation0 [shape = 'u32[]', space=smem, size = 0x4, offset = 0x4, fixed_abs, tag = 'smem constant byte address 0x4 - core index']
  #allocation1 [shape = 'u32[144,128]{1,0:T(1,128)}', space=vmem, size = 0x12000, scoped, tag = 'internal scratch']
  %s0 = inlined_call_operand.hbm [shape: f32[9,32,256], index: 0, kind: input, shape index: {}]
  %s1 = inlined_call_operand.vmem [shape: f32[8,32], index: 1, kind: input, shape index: {}]
  %s2 = inlined_call_operand.vmem [shape: f32[8,1], index: 2, kind: input, shape index: {}]
  %s3 = inlined_call_operand.vmem [shape: f32[32,8], index: 3, kind: input, shape index: {}]
  %s4 = inlined_call_operand.vmem [shape: f32[32,1], index: 4, kind: input, shape index: {}]
  %s5 = inlined_call_operand.hbm [shape: f32[9,32,256], index: 5, kind: output, shape index: {}]
  %s6 = sld [smem:[#allocation0]]
  $region57: #{tpu_custom_call.1} parent=0
    _
  %s8 = ssub.s32 1, %s6
  %s9 = scalar_select 0, %s8, %s6
  $region1: #{tpu_custom_call.1} parent=0
    #allocation2 [shape = 'u8[524288]{0}', space=vmem, size = 0x80000, scoped, tag = 'input window, operand 0']
    #allocation3 [shape = 's32[2]{0}', space=sflag, size = 0x8, scoped, tag = 'scoped memory for tpu_custom_call.1']
    #allocation4 [shape = 's32[2]{0}', space=sflag, size = 0x8, scoped, tag = 'scoped memory for tpu_custom_call.1']
    #allocation5 [shape = 'u8[524288]{0}', space=vmem, size = 0x80000, scoped, tag = 'output window, operand 0']
    %10 = vsyncpa [#allocation3], 0
    %s11 = scalar_lea.sflag [#allocation3], 1
    %12 = vsyncpa %s11, 0
    %13 = vsyncpa [#allocation4], 0
    %s14 = scalar_lea.sflag [#allocation4], 1
    %15 = vsyncpa %s14, 0
    loop: start=0, step=1, limit=4
    $region2: #{tpu_custom_call.1} parent=1 // loop_pre_header
      _
    $region3: #{tpu_custom_call.1} parent=1 // loop_header
      %s17 = sphi 0, %s21
      %p18 = scmp.ge.s32.totalorder %s17, 4
      %s27 = sphi 0, %s29
      %s30 = sphi 0, %s27
      %s31 = sphi 0, %s30
      %s47 = sphi 0, %s31
      %s51 = sphi 0, %s51
      %s53 = sphi 0, %s51
      %s54 = sphi 0, %s53
      %s68 = sphi 0, %s54
      %s72 = sphi 0, %s72
      %s74 = sphi 0, %s72
      %s75 = sphi 0, %s74
      %s89 = sphi 0, %s75
      %s93 = sphi 0, %s93
      %s95 = sphi 0, %s93
      %s96 = sphi 0, %s95
      %s110 = sphi 0, %s96
      %s114 = sphi 0, %s114
      %s116 = sphi 0, %s114
      %s117 = sphi 0, %s116
      %s131 = sphi 0, %s117
      %s137 = sphi 0, %s139
      %s140 = sphi 0, %s137
      %s141 = sphi 0, %s140
      %s157 = sphi 0, %s141
    $region4: #{tpu_custom_call.1} parent=1 // loop_header_branch
      %20 = sbr.rel (%p18) target = $region8
    $region5: #{tpu_custom_call.1} parent=1 // loop_body
      %s22 = ssub.s32 %s17, 1
      %s23 = ssub.s32 %s17, 2
      %s24 = sadd.s32 %s17, 1
      %s25 = ssub.s32 %s17, %s24
      %p26 = scmp.eq.s32.totalorder %s25, 0
      %s28 = sadd.s32 %s27, 1
      %s29 = scalar_select %p26, %s27, %s28
      %p32 = pneg %p26
      %p33 = scmp.eq.s32.totalorder %s17, 1
      %p34 = por %p32, %p33
      %p35 = scmp.ne.s32.totalorder %s27, %s30
      %p36 = scmp.eq.s32.totalorder %s17, 0
      %p37 = por %p35, %p36
      %p38 = scmp.ne.s32.totalorder %s27, %s30
      %p39 = scmp.eq.s32.totalorder %s22, 1
      %p40 = por %p38, %p39
      %p41 = scmp.ne.s32.totalorder %s30, %s31
      %p42 = scmp.eq.s32.totalorder %s22, 0
      %p43 = por %p41, %p42
      %p44 = scmp.ne.s32.totalorder %s30, %s31
      %p45 = scmp.eq.s32.totalorder %s23, 1
      %p46 = por %p44, %p45
      %p48 = scmp.ne.s32.totalorder %s31, %s47
      %p49 = scmp.eq.s32.totalorder %s23, 0
      %p50 = por %p48, %p49
      %s52 = sadd.s32 %s51, 1
      %p55 = scmp.eq.s32.totalorder %s17, 1
      %p56 = scmp.ne.s32.totalorder %s51, %s53
      %p57 = scmp.eq.s32.totalorder %s17, 0
      %p58 = por %p56, %p57
      %p59 = scmp.ne.s32.totalorder %s51, %s53
      %p60 = scmp.eq.s32.totalorder %s22, 1
      %p61 = por %p59, %p60
      %p62 = scmp.ne.s32.totalorder %s53, %s54
      %p63 = scmp.eq.s32.totalorder %s22, 0
      %p64 = por %p62, %p63
      %p65 = scmp.ne.s32.totalorder %s53, %s54
      %p66 = scmp.eq.s32.totalorder %s23, 1
      %p67 = por %p65, %p66
      %p69 = scmp.ne.s32.totalorder %s54, %s68
      %p70 = scmp.eq.s32.totalorder %s23, 0
      %p71 = por %p69, %p70
      %s73 = sadd.s32 %s72, 1
      %p76 = scmp.eq.s32.totalorder %s17, 1
      %p77 = scmp.ne.s32.totalorder %s72, %s74
      %p78 = scmp.eq.s32.totalorder %s17, 0
      %p79 = por %p77, %p78
      %p80 = scmp.ne.s32.totalorder %s72, %s74
      %p81 = scmp.eq.s32.totalorder %s22, 1
      %p82 = por %p80, %p81
      %p83 = scmp.ne.s32.totalorder %s74, %s75
      %p84 = scmp.eq.s32.totalorder %s22, 0
      %p85 = por %p83, %p84
      %p86 = scmp.ne.s32.totalorder %s74, %s75
      %p87 = scmp.eq.s32.totalorder %s23, 1
      %p88 = por %p86, %p87
      %p90 = scmp.ne.s32.totalorder %s75, %s89
      %p91 = scmp.eq.s32.totalorder %s23, 0
      %p92 = por %p90, %p91
      %s94 = sadd.s32 %s93, 1
      %p97 = scmp.eq.s32.totalorder %s17, 1
      %p98 = scmp.ne.s32.totalorder %s93, %s95
      %p99 = scmp.eq.s32.totalorder %s17, 0
      %p100 = por %p98, %p99
      %p101 = scmp.ne.s32.totalorder %s93, %s95
      %p102 = scmp.eq.s32.totalorder %s22, 1
      %p103 = por %p101, %p102
      %p104 = scmp.ne.s32.totalorder %s95, %s96
      %p105 = scmp.eq.s32.totalorder %s22, 0
      %p106 = por %p104, %p105
      %p107 = scmp.ne.s32.totalorder %s95, %s96
      %p108 = scmp.eq.s32.totalorder %s23, 1
      %p109 = por %p107, %p108
      %p111 = scmp.ne.s32.totalorder %s96, %s110
      %p112 = scmp.eq.s32.totalorder %s23, 0
      %p113 = por %p111, %p112
      %s115 = sadd.s32 %s114, 1
      %p118 = scmp.eq.s32.totalorder %s17, 1
      %p119 = scmp.ne.s32.totalorder %s114, %s116
      %p120 = scmp.eq.s32.totalorder %s17, 0
      %p121 = por %p119, %p120
      %p122 = scmp.ne.s32.totalorder %s114, %s116
      %p123 = scmp.eq.s32.totalorder %s22, 1
      %p124 = por %p122, %p123
      %p125 = scmp.ne.s32.totalorder %s116, %s117
      %p126 = scmp.eq.s32.totalorder %s22, 0
      %p127 = por %p125, %p126
      %p128 = scmp.ne.s32.totalorder %s116, %s117
      %p129 = scmp.eq.s32.totalorder %s23, 1
      %p130 = por %p128, %p129
      %p132 = scmp.ne.s32.totalorder %s117, %s131
      %p133 = scmp.eq.s32.totalorder %s23, 0
      %p134 = por %p132, %p133
      %s135 = ssub.s32 %s17, %s24
      %p136 = scmp.eq.s32.totalorder %s135, 0
      %s138 = sadd.s32 %s137, 1
      %s139 = scalar_select %p136, %s137, %s138
      %p142 = pneg %p136
      %p143 = scmp.eq.s32.totalorder %s17, 1
      %p144 = por %p142, %p143
      %p145 = scmp.ne.s32.totalorder %s137, %s140
      %p146 = scmp.eq.s32.totalorder %s17, 0
      %p147 = por %p145, %p146
      %p148 = scmp.ne.s32.totalorder %s137, %s140
      %p149 = scmp.eq.s32.totalorder %s22, 1
      %p150 = por %p148, %p149
      %p151 = scmp.ne.s32.totalorder %s140, %s141
      %p152 = scmp.eq.s32.totalorder %s22, 0
      %p153 = por %p151, %p152
      %p154 = scmp.ne.s32.totalorder %s140, %s141
      %p155 = scmp.eq.s32.totalorder %s23, 1
      %p156 = por %p154, %p155
      %p158 = scmp.ne.s32.totalorder %s141, %s157
      %p159 = scmp.eq.s32.totalorder %s23, 0
      %p160 = por %p158, %p159
      %p161 = scmp.le.s32.totalorder 1, %s17
      %p162 = scmp.lt.s32.totalorder %s17, 3
      %p163 = pnand %p161, %p162
      %p164 = pneg %p163
      // Predicated region
      $region9: #{tpu_custom_call.1} parent=5 // pred_check
        _
      $region10: #{tpu_custom_call.1} parent=5 // pred_check_branch
        %166 = sbr.rel (%p163) target = $region12
      $region11: #{tpu_custom_call.1} parent=5 // pred_region
        %s167 = ssub.s32 %s17, 1
        // Predicated region
        $region13: #{tpu_custom_call.1} parent=11 // pred_check
          %p168 = pneg %p64
        $region14: #{tpu_custom_call.1} parent=11 // pred_check_branch
          %170 = sbr.rel (%p168) target = $region16
        $region15: #{tpu_custom_call.1} parent=11 // pred_region
          _
        $region16: #{tpu_custom_call.1} parent=11 // pred_fallthru
          _
        // Predicated region
        $region17: #{tpu_custom_call.1} parent=11 // pred_check
          %p171 = pneg %p85
        $region18: #{tpu_custom_call.1} parent=11 // pred_check_branch
          %173 = sbr.rel (%p171) target = $region20
        $region19: #{tpu_custom_call.1} parent=11 // pred_region
          _
        $region20: #{tpu_custom_call.1} parent=11 // pred_fallthru
          _
        // Predicated region
        $region21: #{tpu_custom_call.1} parent=11 // pred_check
          %p174 = pneg %p106
        $region22: #{tpu_custom_call.1} parent=11 // pred_check_branch
          %176 = sbr.rel (%p174) target = $region24
        $region23: #{tpu_custom_call.1} parent=11 // pred_region
          _
        $region24: #{tpu_custom_call.1} parent=11 // pred_fallthru
          _
        // Predicated region
        $region25: #{tpu_custom_call.1} parent=11 // pred_check
          %p177 = pneg %p127
        $region26: #{tpu_custom_call.1} parent=11 // pred_check_branch
          %179 = sbr.rel (%p177) target = $region28
        $region27: #{tpu_custom_call.1} parent=11 // pred_region
          _
        $region28: #{tpu_custom_call.1} parent=11 // pred_fallthru
          _
      $region12: #{tpu_custom_call.1} parent=5 // pred_fallthru
        _
      %p180 = scmp.lt.s32.totalorder %s17, 2
      // Predicated region
      $region29: #{tpu_custom_call.1} parent=5 // pred_check
        %p181 = pneg %p180
      $region30: #{tpu_custom_call.1} parent=5 // pred_check_branch
        %183 = sbr.rel (%p181) target = $region32
      $region31: #{tpu_custom_call.1} parent=5 // pred_region
        // Predicated region
        $region33: #{tpu_custom_call.1} parent=31 // pred_check
          %p184 = pneg %p37
        $region34: #{tpu_custom_call.1} parent=31 // pred_check_branch
          %186 = sbr.rel (%p184) target = $region36
        $region35: #{tpu_custom_call.1} parent=31 // pred_region
          %s187 = sand.u32 %s27, 1
          %s188 = scalar_lea.sflag [#allocation3], %s187
          %s189 = sand.u32 %s27, 1
          %s190 = smul.addr %s189, 512
          %s191 = scalar_lea.vmem [#allocation2], %s190
          %s192 = smul.u32 8, %s17
          %s193 = ssub.s32 9, %s192
          %p194 = scmp.lt.s32.totalorder %s193, 8
          %s195 = scalar_select %p194, %s193, 8
          %s196 = smul.u32 128, %s195
          %s197 = smul.u32 %s196, 4
          %s198 = smul.u32 %s197, 2
          %s200 = ssub.s32 8192, %s198
          %201 = vsyncadd %s188, %s200
          %p202 = scmp.ne.s32.totalorder 0, %s198
          %s203 = smul.addr %s192, 8
          %s204 = smul.addr %s203, 128
          %s205 = scalar_lea.hbm %s0, %s204
          %s206 = smul.u32 %s195, 4
          %s207 = smul.u32 16, %s206
          %s208 = sshll.u32 %s191, 4
          %s209 = int_to_ptr.vmem [resolvable:$true] %s208
          %s210 = sshll.u32 %s207, 4
          %214 = dma.hbm_to_vmem [thread:$0]  (%p202), %s205, %s210, %s209, %s188, 256, 256, 16
        $region36: #{tpu_custom_call.1} parent=31 // pred_fallthru
          _
      $region32: #{tpu_custom_call.1} parent=5 // pred_fallthru
        _
      %p215 = scmp.le.s32.totalorder 1, %s17
      %p216 = scmp.lt.s32.totalorder %s17, 3
      %p217 = pnand %p215, %p216
      %p218 = pneg %p217
      // Predicated region
      $region37: #{tpu_custom_call.1} parent=5 // pred_check
        _
      $region38: #{tpu_custom_call.1} parent=5 // pred_check_branch
        %220 = sbr.rel (%p217) target = $region40
      $region39: #{tpu_custom_call.1} parent=5 // pred_region
        %s221 = ssub.s32 %s17, 1
        %s222 = sand.u32 %s30, 1
        %s223 = scalar_lea.sflag [#allocation3], %s222
        %s224 = sand.u32 %s30, 1
        %s225 = smul.addr %s224, 512
        %s226 = scalar_lea.vmem [#allocation2], %s225
        // Predicated region
        $region41: #{tpu_custom_call.1} parent=39 // pred_check
          %p227 = pneg %p43
        $region42: #{tpu_custom_call.1} parent=39 // pred_check_branch
          %229 = sbr.rel (%p227) target = $region44
        $region43: #{tpu_custom_call.1} parent=39 // pred_region
          %230 = dma.done %s223, 8192
        $region44: #{tpu_custom_call.1} parent=39 // pred_fallthru
          _
        %s231 = sand.u32 %s30, 1
        %s232 = scalar_lea.sflag [#allocation3], %s231
        %s233 = sand.u32 %s30, 1
        %s234 = smul.addr %s233, 512
        %s235 = scalar_lea.vmem [#allocation2], %s234
        %p236 = pneg %p43
        %p237 = pneg %p40
        %p238 = pneg %p64
        %p239 = pneg %p61
        %p240 = pneg %p85
        %p241 = pneg %p82
        %p242 = pneg %p106
        %p243 = pneg %p103
        %p244 = pneg %p127
        %p245 = pneg %p124
        %p246 = pneg %p153
        %p247 = pneg %p150
        %s248 = sand.u32 %s140, 1
        %s249 = scalar_lea.sflag [#allocation4], %s248
        %s250 = sand.u32 %s140, 1
        %s251 = smul.addr %s250, 512
        %s252 = scalar_lea.vmem [#allocation5], %s251
        %s253 = smul.u32 8, %s22
        %s254 = ssub.s32 9, %s253
        %p255 = scmp.lt.s32.totalorder %s254, 8
        %s256 = scalar_select %p255, %s254, 8
        %s257 = smul.u32 128, %s256
        %s258 = smul.u32 %s257, 4
        %s259 = smul.u32 %s258, 2
        %s260 = smul.u32 8, %s22
        %s261 = ssub.s32 9, %s260
        %p262 = scmp.lt.s32.totalorder %s261, 8
        %s263 = scalar_select %p262, %s261, 8
        %s264 = smul.u32 128, %s263
        %s265 = smul.u32 %s264, 4
        %s266 = smul.u32 %s265, 2
        %v267 = vld [vmem:[%s226] sm:$0xff]
        %v268 = vld [vmem:[%s226 + $0x8] sm:$0xff]
        %v269 = vld [vmem:[%s226 + $0x10] sm:$0xff]
        %v270 = vld [vmem:[%s226 + $0x18] sm:$0xff]
        %v271 = vld [vmem:[%s226 + $0x20] sm:$0xff]
        %v272 = vld [vmem:[%s226 + $0x28] sm:$0xff]
        %v273 = vld [vmem:[%s226 + $0x30] sm:$0xff]
        %v274 = vld [vmem:[%s226 + $0x38] sm:$0xff]
        %v275 = vld [vmem:[%s226 + $0x40] sm:$0xff]
        %v276 = vld [vmem:[%s226 + $0x48] sm:$0xff]
        %v277 = vld [vmem:[%s226 + $0x50] sm:$0xff]
        %v278 = vld [vmem:[%s226 + $0x58] sm:$0xff]
        %v279 = vld [vmem:[%s226 + $0x60] sm:$0xff]
        %v280 = vld [vmem:[%s226 + $0x68] sm:$0xff]
        %v281 = vld [vmem:[%s226 + $0x70] sm:$0xff]
        %v282 = vld [vmem:[%s226 + $0x78] sm:$0xff]
        %v283 = vld [vmem:[%s226 + $0x80] sm:$0xff]
        %v284 = vld [vmem:[%s226 + $0x88] sm:$0xff]
        %v285 = vld [vmem:[%s226 + $0x90] sm:$0xff]
        %v286 = vld [vmem:[%s226 + $0x98] sm:$0xff]
        %v287 = vld [vmem:[%s226 + $0xa0] sm:$0xff]
        %v288 = vld [vmem:[%s226 + $0xa8] sm:$0xff]
        %v289 = vld [vmem:[%s226 + $0xb0] sm:$0xff]
        %v290 = vld [vmem:[%s226 + $0xb8] sm:$0xff]
        %v291 = vld [vmem:[%s226 + $0xc0] sm:$0xff]
        %v292 = vld [vmem:[%s226 + $0xc8] sm:$0xff]
        %v293 = vld [vmem:[%s226 + $0xd0] sm:$0xff]
        %v294 = vld [vmem:[%s226 + $0xd8] sm:$0xff]
        %v295 = vld [vmem:[%s226 + $0xe0] sm:$0xff]
        %v296 = vld [vmem:[%s226 + $0xe8] sm:$0xff]
        %v297 = vld [vmem:[%s226 + $0xf0] sm:$0xff]
        %v298 = vld [vmem:[%s226 + $0xf8] sm:$0xff]
        %v299 = vld [vmem:[%s226 + $0x100] sm:$0xff]
        %v300 = vld [vmem:[%s226 + $0x108] sm:$0xff]
        %v301 = vld [vmem:[%s226 + $0x110] sm:$0xff]
        %v302 = vld [vmem:[%s226 + $0x118] sm:$0xff]
        %v303 = vld [vmem:[%s226 + $0x120] sm:$0xff]
        %v304 = vld [vmem:[%s226 + $0x128] sm:$0xff]
        %v305 = vld [vmem:[%s226 + $0x130] sm:$0xff]
        %v306 = vld [vmem:[%s226 + $0x138] sm:$0xff]
        %v307 = vld [vmem:[%s226 + $0x140] sm:$0xff]
        %v308 = vld [vmem:[%s226 + $0x148] sm:$0xff]
        %v309 = vld [vmem:[%s226 + $0x150] sm:$0xff]
        %v310 = vld [vmem:[%s226 + $0x158] sm:$0xff]
        %v311 = vld [vmem:[%s226 + $0x160] sm:$0xff]
        %v312 = vld [vmem:[%s226 + $0x168] sm:$0xff]
        %v313 = vld [vmem:[%s226 + $0x170] sm:$0xff]
        %v314 = vld [vmem:[%s226 + $0x178] sm:$0xff]
        %v315 = vld [vmem:[%s226 + $0x180] sm:$0xff]
        %v316 = vld [vmem:[%s226 + $0x188] sm:$0xff]
        %v317 = vld [vmem:[%s226 + $0x190] sm:$0xff]
        %v318 = vld [vmem:[%s226 + $0x198] sm:$0xff]
        %v319 = vld [vmem:[%s226 + $0x1a0] sm:$0xff]
        %v320 = vld [vmem:[%s226 + $0x1a8] sm:$0xff]
        %v321 = vld [vmem:[%s226 + $0x1b0] sm:$0xff]
        %v322 = vld [vmem:[%s226 + $0x1b8] sm:$0xff]
        %v323 = vld [vmem:[%s226 + $0x1c0] sm:$0xff]
        %v324 = vld [vmem:[%s226 + $0x1c8] sm:$0xff]
        %v325 = vld [vmem:[%s226 + $0x1d0] sm:$0xff]
        %v326 = vld [vmem:[%s226 + $0x1d8] sm:$0xff]
        %v327 = vld [vmem:[%s226 + $0x1e0] sm:$0xff]
        %v328 = vld [vmem:[%s226 + $0x1e8] sm:$0xff]
        %v329 = vld [vmem:[%s226 + $0x1f0] sm:$0xff]
        %v330 = vld [vmem:[%s226 + $0x1f8] sm:$0xff]
        %v331 = vadd.f32 %v267, %v268
        %332 = vadd.xlane.f32.xlu0 %v331
        %v333 = vpop.xlane.xlu0 %332
        %v334 = vadd.f32 %v269, %v270
        %335 = vadd.xlane.f32.xlu0 %v334
        %v336 = vpop.xlane.xlu0 %335
        %v337 = vadd.f32 %v271, %v272
        %338 = vadd.xlane.f32.xlu0 %v337
        %v339 = vpop.xlane.xlu0 %338
        %v340 = vadd.f32 %v273, %v274
        %341 = vadd.xlane.f32.xlu0 %v340
        %v342 = vpop.xlane.xlu0 %341
        %v343 = vadd.f32 %v275, %v276
        %344 = vadd.xlane.f32.xlu0 %v343
        %v345 = vpop.xlane.xlu0 %344
        %v346 = vadd.f32 %v277, %v278
        %347 = vadd.xlane.f32.xlu0 %v346
        %v348 = vpop.xlane.xlu0 %347
        %v349 = vadd.f32 %v279, %v280
        %350 = vadd.xlane.f32.xlu0 %v349
        %v351 = vpop.xlane.xlu0 %350
        %v352 = vadd.f32 %v281, %v282
        %353 = vadd.xlane.f32.xlu0 %v352
        %v354 = vpop.xlane.xlu0 %353
        %v355 = vadd.f32 %v283, %v284
        %356 = vadd.xlane.f32.xlu0 %v355
        %v357 = vpop.xlane.xlu0 %356
        %v358 = vadd.f32 %v285, %v286
        %359 = vadd.xlane.f32.xlu0 %v358
        %v360 = vpop.xlane.xlu0 %359
        %v361 = vadd.f32 %v287, %v288
        %362 = vadd.xlane.f32.xlu0 %v361
        %v363 = vpop.xlane.xlu0 %362
        %v364 = vadd.f32 %v289, %v290
        %365 = vadd.xlane.f32.xlu0 %v364
        %v366 = vpop.xlane.xlu0 %365
        %v367 = vadd.f32 %v291, %v292
        %368 = vadd.xlane.f32.xlu0 %v367
        %v369 = vpop.xlane.xlu0 %368
        %v370 = vadd.f32 %v293, %v294
        %371 = vadd.xlane.f32.xlu0 %v370
        %v372 = vpop.xlane.xlu0 %371
        %v373 = vadd.f32 %v295, %v296
        %374 = vadd.xlane.f32.xlu0 %v373
        %v375 = vpop.xlane.xlu0 %374
        %v376 = vadd.f32 %v297, %v298
        %377 = vadd.xlane.f32.xlu0 %v376
        %v378 = vpop.xlane.xlu0 %377
        %v379 = vadd.f32 %v299, %v300
        %380 = vadd.xlane.f32.xlu0 %v379
        %v381 = vpop.xlane.xlu0 %380
        %v382 = vadd.f32 %v301, %v302
        %383 = vadd.xlane.f32.xlu0 %v382
        %v384 = vpop.xlane.xlu0 %383
        %v385 = vadd.f32 %v303, %v304
        %386 = vadd.xlane.f32.xlu0 %v385
        %v387 = vpop.xlane.xlu0 %386
        %v388 = vadd.f32 %v305, %v306
        %389 = vadd.xlane.f32.xlu0 %v388
        %v390 = vpop.xlane.xlu0 %389
        %v391 = vadd.f32 %v307, %v308
        %392 = vadd.xlane.f32.xlu0 %v391
        %v393 = vpop.xlane.xlu0 %392
        %v394 = vadd.f32 %v309, %v310
        %395 = vadd.xlane.f32.xlu0 %v394
        %v396 = vpop.xlane.xlu0 %395
        %v397 = vadd.f32 %v311, %v312
        %398 = vadd.xlane.f32.xlu0 %v397
        %v399 = vpop.xlane.xlu0 %398
        %v400 = vadd.f32 %v313, %v314
        %401 = vadd.xlane.f32.xlu0 %v400
        %v402 = vpop.xlane.xlu0 %401
        %v403 = vadd.f32 %v315, %v316
        %404 = vadd.xlane.f32.xlu0 %v403
        %v405 = vpop.xlane.xlu0 %404
        %v406 = vadd.f32 %v317, %v318
        %407 = vadd.xlane.f32.xlu0 %v406
        %v408 = vpop.xlane.xlu0 %407
        %v409 = vadd.f32 %v319, %v320
        %410 = vadd.xlane.f32.xlu0 %v409
        %v411 = vpop.xlane.xlu0 %410
        %v412 = vadd.f32 %v321, %v322
        %413 = vadd.xlane.f32.xlu0 %v412
        %v414 = vpop.xlane.xlu0 %413
        %v415 = vadd.f32 %v323, %v324
        %416 = vadd.xlane.f32.xlu0 %v415
        %v417 = vpop.xlane.xlu0 %416
        %v418 = vadd.f32 %v325, %v326
        %419 = vadd.xlane.f32.xlu0 %v418
        %v420 = vpop.xlane.xlu0 %419
        %v421 = vadd.f32 %v327, %v328
        %422 = vadd.xlane.f32.xlu0 %v421
        %v423 = vpop.xlane.xlu0 %422
        %v424 = vadd.f32 %v329, %v330
        %425 = vadd.xlane.f32.xlu0 %v424
        %v426 = vpop.xlane.xlu0 %425
        %v427 = vmul.f32 %v333, 0.00390625
        %v428 = vmul.f32 %v336, 0.00390625
        %v429 = vmul.f32 %v339, 0.00390625
        %v430 = vmul.f32 %v342, 0.00390625
        %v431 = vmul.f32 %v345, 0.00390625
        %v432 = vmul.f32 %v348, 0.00390625
        %v433 = vmul.f32 %v351, 0.00390625
        %v434 = vmul.f32 %v354, 0.00390625
        %v435 = vmul.f32 %v357, 0.00390625
        %v436 = vmul.f32 %v360, 0.00390625
        %v437 = vmul.f32 %v363, 0.00390625
        %v438 = vmul.f32 %v366, 0.00390625
        %v439 = vmul.f32 %v369, 0.00390625
        %v440 = vmul.f32 %v372, 0.00390625
        %v441 = vmul.f32 %v375, 0.00390625
        %v442 = vmul.f32 %v378, 0.00390625
        %v443 = vmul.f32 %v381, 0.00390625
        %v444 = vmul.f32 %v384, 0.00390625
        %v445 = vmul.f32 %v387, 0.00390625
        %v446 = vmul.f32 %v390, 0.00390625
        %v447 = vmul.f32 %v393, 0.00390625
        %v448 = vmul.f32 %v396, 0.00390625
        %v449 = vmul.f32 %v399, 0.00390625
        %v450 = vmul.f32 %v402, 0.00390625
        %v451 = vmul.f32 %v405, 0.00390625
        %v452 = vmul.f32 %v408, 0.00390625
        %v453 = vmul.f32 %v411, 0.00390625
        %v454 = vmul.f32 %v414, 0.00390625
        %v455 = vmul.f32 %v417, 0.00390625
        %v456 = vmul.f32 %v420, 0.00390625
        %v457 = vmul.f32 %v423, 0.00390625
        %v458 = vmul.f32 %v426, 0.00390625
        %v459 = vmax.f32 %v267, %v268
        %460 = vmax.xlane.f32.xlu0 %v459
        %v461 = vpop.xlane.xlu0 %460
        %v462 = vmax.f32 %v269, %v270
        %463 = vmax.xlane.f32.xlu0 %v462
        %v464 = vpop.xlane.xlu0 %463
        %v465 = vmax.f32 %v271, %v272
        %466 = vmax.xlane.f32.xlu0 %v465
        %v467 = vpop.xlane.xlu0 %466
        %v468 = vmax.f32 %v273, %v274
        %469 = vmax.xlane.f32.xlu0 %v468
        %v470 = vpop.xlane.xlu0 %469
        %v471 = vmax.f32 %v275, %v276
        %472 = vmax.xlane.f32.xlu0 %v471
        %v473 = vpop.xlane.xlu0 %472
        %v474 = vmax.f32 %v277, %v278
        %475 = vmax.xlane.f32.xlu0 %v474
        %v476 = vpop.xlane.xlu0 %475
        %v477 = vmax.f32 %v279, %v280
        %478 = vmax.xlane.f32.xlu0 %v477
        %v479 = vpop.xlane.xlu0 %478
        %v480 = vmax.f32 %v281, %v282
        %481 = vmax.xlane.f32.xlu0 %v480
        %v482 = vpop.xlane.xlu0 %481
        %v483 = vmax.f32 %v283, %v284
        %484 = vmax.xlane.f32.xlu0 %v483
        %v485 = vpop.xlane.xlu0 %484
        %v486 = vmax.f32 %v285, %v286
        %487 = vmax.xlane.f32.xlu0 %v486
        %v488 = vpop.xlane.xlu0 %487
        %v489 = vmax.f32 %v287, %v288
        %490 = vmax.xlane.f32.xlu0 %v489
        %v491 = vpop.xlane.xlu0 %490
        %v492 = vmax.f32 %v289, %v290
        %493 = vmax.xlane.f32.xlu0 %v492
        %v494 = vpop.xlane.xlu0 %493
        %v495 = vmax.f32 %v291, %v292
        %496 = vmax.xlane.f32.xlu0 %v495
        %v497 = vpop.xlane.xlu0 %496
        %v498 = vmax.f32 %v293, %v294
        %499 = vmax.xlane.f32.xlu0 %v498
        %v500 = vpop.xlane.xlu0 %499
        %v501 = vmax.f32 %v295, %v296
        %502 = vmax.xlane.f32.xlu0 %v501
        %v503 = vpop.xlane.xlu0 %502
        %v504 = vmax.f32 %v297, %v298
        %505 = vmax.xlane.f32.xlu0 %v504
        %v506 = vpop.xlane.xlu0 %505
        %v507 = vmax.f32 %v299, %v300
        %508 = vmax.xlane.f32.xlu0 %v507
        %v509 = vpop.xlane.xlu0 %508
        %v510 = vmax.f32 %v301, %v302
        %511 = vmax.xlane.f32.xlu0 %v510
        %v512 = vpop.xlane.xlu0 %511
        %v513 = vmax.f32 %v303, %v304
        %514 = vmax.xlane.f32.xlu0 %v513
        %v515 = vpop.xlane.xlu0 %514
        %v516 = vmax.f32 %v305, %v306
        %517 = vmax.xlane.f32.xlu0 %v516
        %v518 = vpop.xlane.xlu0 %517
        %v519 = vmax.f32 %v307, %v308
        %520 = vmax.xlane.f32.xlu0 %v519
        %v521 = vpop.xlane.xlu0 %520
        %v522 = vmax.f32 %v309, %v310
        %523 = vmax.xlane.f32.xlu0 %v522
        %v524 = vpop.xlane.xlu0 %523
        %v525 = vmax.f32 %v311, %v312
        %526 = vmax.xlane.f32.xlu0 %v525
        %v527 = vpop.xlane.xlu0 %526
        %v528 = vmax.f32 %v313, %v314
        %529 = vmax.xlane.f32.xlu0 %v528
        %v530 = vpop.xlane.xlu0 %529
        %v531 = vmax.f32 %v315, %v316
        %532 = vmax.xlane.f32.xlu0 %v531
        %v533 = vpop.xlane.xlu0 %532
        %v534 = vmax.f32 %v317, %v318
        %535 = vmax.xlane.f32.xlu0 %v534
        %v536 = vpop.xlane.xlu0 %535
        %v537 = vmax.f32 %v319, %v320
        %538 = vmax.xlane.f32.xlu0 %v537
        %v539 = vpop.xlane.xlu0 %538
        %v540 = vmax.f32 %v321, %v322
        %541 = vmax.xlane.f32.xlu0 %v540
        %v542 = vpop.xlane.xlu0 %541
        %v543 = vmax.f32 %v323, %v324
        %544 = vmax.xlane.f32.xlu0 %v543
        %v545 = vpop.xlane.xlu0 %544
        %v546 = vmax.f32 %v325, %v326
        %547 = vmax.xlane.f32.xlu0 %v546
        %v548 = vpop.xlane.xlu0 %547
        %v549 = vmax.f32 %v327, %v328
        %550 = vmax.xlane.f32.xlu0 %v549
        %v551 = vpop.xlane.xlu0 %550
        %v552 = vmax.f32 %v329, %v330
        %553 = vmax.xlane.f32.xlu0 %v552
        %v554 = vpop.xlane.xlu0 %553
        %v555 = vlaneseq
        %v556 = vand.u32 %v555, 127
        %vm557 = vcmp.eq.s32.totalorder %v556, 0
        %v558 = vsel %vm557, %v427, 0.0
        %v559 = vsel %vm557, %v428, 0.0
        %v560 = vsel %vm557, %v429, 0.0
        %v561 = vsel %vm557, %v430, 0.0
        %vm562 = vcmp.eq.s32.totalorder %v556, 1
        %v563 = vsel %vm562, %v431, %v558
        %v564 = vsel %vm562, %v432, %v559
        %v565 = vsel %vm562, %v433, %v560
        %v566 = vsel %vm562, %v434, %v561
        %vm567 = vcmp.eq.s32.totalorder %v556, 2
        %v568 = vsel %vm567, %v435, %v563
        %v569 = vsel %vm567, %v436, %v564
        %v570 = vsel %vm567, %v437, %v565
        %v571 = vsel %vm567, %v438, %v566
        %vm572 = vcmp.eq.s32.totalorder %v556, 3
        %v573 = vsel %vm572, %v439, %v568
        %v574 = vsel %vm572, %v440, %v569
        %v575 = vsel %vm572, %v441, %v570
        %v576 = vsel %vm572, %v442, %v571
        %vm577 = vcmp.eq.s32.totalorder %v556, 4
        %v578 = vsel %vm577, %v443, %v573
        %v579 = vsel %vm577, %v444, %v574
        %v580 = vsel %vm577, %v445, %v575
        %v581 = vsel %vm577, %v446, %v576
        %vm582 = vcmp.eq.s32.totalorder %v556, 5
        %v583 = vsel %vm582, %v447, %v578
        %v584 = vsel %vm582, %v448, %v579
        %v585 = vsel %vm582, %v449, %v580
        %v586 = vsel %vm582, %v450, %v581
        %vm587 = vcmp.eq.s32.totalorder %v556, 6
        %v588 = vsel %vm587, %v451, %v583
        %v589 = vsel %vm587, %v452, %v584
        %v590 = vsel %vm587, %v453, %v585
        %v591 = vsel %vm587, %v454, %v586
        %vm592 = vcmp.eq.s32.totalorder %v556, 7
        %v593 = vsel %vm592, %v455, %v588
        %v594 = vsel %vm592, %v456, %v589
        %v595 = vsel %vm592, %v457, %v590
        %v596 = vsel %vm592, %v458, %v591
        %vm597 = vcmp.eq.s32.totalorder %v556, 8
        %v598 = vsel %vm597, %v461, %v593
        %v599 = vsel %vm597, %v464, %v594
        %v600 = vsel %vm597, %v467, %v595
        %v601 = vsel %vm597, %v470, %v596
        %vm602 = vcmp.eq.s32.totalorder %v556, 9
        %v603 = vsel %vm602, %v473, %v598
        %v604 = vsel %vm602, %v476, %v599
        %v605 = vsel %vm602, %v479, %v600
        %v606 = vsel %vm602, %v482, %v601
        %vm607 = vcmp.eq.s32.totalorder %v556, 10
        %v608 = vsel %vm607, %v485, %v603
        %v609 = vsel %vm607, %v488, %v604
        %v610 = vsel %vm607, %v491, %v605
        %v611 = vsel %vm607, %v494, %v606
        %vm612 = vcmp.eq.s32.totalorder %v556, 11
        %v613 = vsel %vm612, %v497, %v608
        %v614 = vsel %vm612, %v500, %v609
        %v615 = vsel %vm612, %v503, %v610
        %v616 = vsel %vm612, %v506, %v611
        %vm617 = vcmp.eq.s32.totalorder %v556, 12
        %v618 = vsel %vm617, %v509, %v613
        %v619 = vsel %vm617, %v512, %v614
        %v620 = vsel %vm617, %v515, %v615
        %v621 = vsel %vm617, %v518, %v616
        %vm622 = vcmp.eq.s32.totalorder %v556, 13
        %v623 = vsel %vm622, %v521, %v618
        %v624 = vsel %vm622, %v524, %v619
        %v625 = vsel %vm622, %v527, %v620
        %v626 = vsel %vm622, %v530, %v621
        %vm627 = vcmp.eq.s32.totalorder %v556, 14
        %v628 = vsel %vm627, %v533, %v623
        %v629 = vsel %vm627, %v536, %v624
        %v630 = vsel %vm627, %v539, %v625
        %v631 = vsel %vm627, %v542, %v626
        %vm632 = vcmp.eq.s32.totalorder %v556, 15
        %v633 = vsel %vm632, %v545, %v628
        %v634 = vsel %vm632, %v548, %v629
        %v635 = vsel %vm632, %v551, %v630
        %v636 = vsel %vm632, %v554, %v631
        %v637 = vld [vmem:[%s1] sm:$0xff]
        %v638 = vld [vmem:[%s2] sm:$0xff]
        %640 = vset.pattern.permute.xlu0 0
        %641 = vperm.xlu0 %640, %v638
        %v642 = vpop.permute.xlu0 %641
        %vm644 = vcmask 261120
        %v646 = vsel %vm644, %v637, 0
        %648 = vmatprep.subr.mxu0 0.0
        %649 = vmatpush1.msra.mxu0 %v633
        %650 = vmatprep.subr.mxu0 0.0
        %651 = vmatpush1.msra.mxu0 %v634
        %652 = vmatprep.subr.mxu0 0.0
        %653 = vmatpush1.msra.mxu0 %v635
        %654 = vmatprep.subr.mxu0 0.0
        %655 = vmatpush1.msra.mxu0 %v636
        %656 = vmatprep.subr.mxu0 0.0
        %657 = vmatpush1.msra.mxu0 0.0
        %658 = vmatprep.subr.mxu0 0.0
        %659 = vmatpush1.msra.mxu0 0.0
        %660 = vmatprep.subr.mxu0 0.0
        %661 = vmatpush1.msra.mxu0 0.0
        %662 = vmatprep.subr.mxu0 0.0
        %663 = vmatpush1.msra.mxu0 0.0
        %664 = vmatprep.subr.mxu0 0.0
        %665 = vmatpush1.msra.mxu0 0.0
        %666 = vmatprep.subr.mxu0 0.0
        %667 = vmatpush1.msra.mxu0 0.0
        %668 = vmatprep.subr.mxu0 0.0
        %669 = vmatpush1.msra.mxu0 0.0
        %670 = vmatprep.subr.mxu0 0.0
        %671 = vmatpush1.msra.mxu0 0.0
        %672 = vmatprep.subr.mxu0 0.0
        %673 = vmatpush1.msra.mxu0 0.0
        %674 = vmatprep.subr.mxu0 0.0
        %675 = vmatpush1.msra.mxu0 0.0
        %676 = vmatprep.subr.mxu0 0.0
        %677 = vmatpush1.msra.mxu0 0.0
        %678 = vmatprep.subr.mxu0 0.0
        %679 = vmatpush1.msra.mxu0 0.0
        %680 = vmatprep.subr.mxu0 0.0
        %681 = vmatpush1.msra.mxu0 0.0
        %682 = vmatprep.subr.mxu0 0.0
        %683 = vmatpush1.msra.mxu0 0.0
        %684 = vmatprep.subr.mxu0 0.0
        %685 = vmatpush1.msra.mxu0 0.0
        %686 = vmatprep.subr.mxu0 0.0
        %687 = vmatpush1.msra.mxu0 0.0
        %688 = vmatprep.subr.mxu0 0.0
        %689 = vmatpush1.msra.mxu0 0.0
        %690 = vmatprep.subr.mxu0 0.0
        %691 = vmatpush1.msra.mxu0 0.0
        %692 = vmatprep.subr.mxu0 0.0
        %693 = vmatpush1.msra.mxu0 0.0
        %694 = vmatprep.subr.mxu0 0.0
        %695 = vmatpush1.msra.mxu0 0.0
        %696 = vmatprep.subr.mxu0 0.0
        %697 = vmatpush1.msra.mxu0 0.0
        %698 = vmatprep.subr.mxu0 0.0
        %699 = vmatpush1.msra.mxu0 0.0
        %700 = vmatprep.subr.mxu0 0.0
        %701 = vmatpush1.msra.mxu0 0.0
        %702 = vmatprep.subr.mxu0 0.0
        %703 = vmatpush1.msra.mxu0 0.0
        %704 = vmatprep.subr.mxu0 0.0
        %705 = vmatpush1.msra.mxu0 0.0
        %706 = vmatprep.subr.mxu0 0.0
        %707 = vmatpush1.msra.mxu0 0.0
        %708 = vmatprep.subr.mxu0 0.0
        %709 = vmatpush1.msra.mxu0 0.0
        %710 = vmatprep.subr.mxu0 0.0
        %711 = vmatpush1.msra.mxu0 0.0
        %712 = vmatprep.mubr.f32.mxu0 0.0
        %713 = vmatmul.mubr.f32.gmra.mrb[0].mxu0 %v646
        %v714 = vpop.f32.mrb[0].mxu0
        %v715 = vadd.f32 %v642, %v714
        %v716 = vpop.f32.mrb[0].mxu0
        %717 = vdwg.mxu0
        %v718 = vmax.f32 %v715, 0.0
        %v719 = vld [vmem:[%s3] sm:$0xff]
        %v720 = vld [vmem:[%s3 + $0x8] sm:$0xff]
        %v721 = vld [vmem:[%s3 + $0x10] sm:$0xff]
        %v722 = vld [vmem:[%s3 + $0x18] sm:$0xff]
        %v723 = vld [vmem:[%s4] sm:$0xff]
        %v724 = vld [vmem:[%s4 + $0x8] sm:$0xff]
        %v725 = vld [vmem:[%s4 + $0x10] sm:$0xff]
        %v726 = vld [vmem:[%s4 + $0x18] sm:$0xff]
        %728 = vset.pattern.permute.xlu0 0
        %729 = vperm.xlu0 %728, %v723
        %v730 = vpop.permute.xlu0 %729
        %733 = vset.pattern.permute.xlu0 0
        %734 = vperm.xlu0 %733, %v724
        %v735 = vpop.permute.xlu0 %734
        %738 = vset.pattern.permute.xlu0 0
        %739 = vperm.xlu0 %738, %v725
        %v740 = vpop.permute.xlu0 %739
        %743 = vset.pattern.permute.xlu0 0
        %744 = vperm.xlu0 %743, %v726
        %v745 = vpop.permute.xlu0 %744
        %vm747 = vcmask 64512
        %v749 = vsel %vm747, %v719, 0
        %v752 = vsel %vm747, %v720, 0
        %v755 = vsel %vm747, %v721, 0
        %v758 = vsel %vm747, %v722, 0
        %760 = vmatprep.subr.mxu0 0.0
        %761 = vmatpush1.msra.mxu0 %v718
        %762 = vmatprep.subr.mxu0 0.0
        %763 = vmatpush1.msra.mxu0 0.0
        %764 = vmatprep.subr.mxu0 0.0
        %765 = vmatpush1.msra.mxu0 0.0
        %766 = vmatprep.subr.mxu0 0.0
        %767 = vmatpush1.msra.mxu0 0.0
        %768 = vmatprep.subr.mxu0 0.0
        %769 = vmatpush1.msra.mxu0 0.0
        %770 = vmatprep.subr.mxu0 0.0
        %771 = vmatpush1.msra.mxu0 0.0
        %772 = vmatprep.subr.mxu0 0.0
        %773 = vmatpush1.msra.mxu0 0.0
        %774 = vmatprep.subr.mxu0 0.0
        %775 = vmatpush1.msra.mxu0 0.0
        %776 = vmatprep.subr.mxu0 0.0
        %777 = vmatpush1.msra.mxu0 0.0
        %778 = vmatprep.subr.mxu0 0.0
        %779 = vmatpush1.msra.mxu0 0.0
        %780 = vmatprep.subr.mxu0 0.0
        %781 = vmatpush1.msra.mxu0 0.0
        %782 = vmatprep.subr.mxu0 0.0
        %783 = vmatpush1.msra.mxu0 0.0
        %784 = vmatprep.subr.mxu0 0.0
        %785 = vmatpush1.msra.mxu0 0.0
        %786 = vmatprep.subr.mxu0 0.0
        %787 = vmatpush1.msra.mxu0 0.0
        %788 = vmatprep.subr.mxu0 0.0
        %789 = vmatpush1.msra.mxu0 0.0
        %790 = vmatprep.subr.mxu0 0.0
        %791 = vmatpush1.msra.mxu0 0.0
        %792 = vmatprep.subr.mxu0 0.0
        %793 = vmatpush1.msra.mxu0 0.0
        %794 = vmatprep.subr.mxu0 0.0
        %795 = vmatpush1.msra.mxu0 0.0
        %796 = vmatprep.subr.mxu0 0.0
        %797 = vmatpush1.msra.mxu0 0.0
        %798 = vmatprep.subr.mxu0 0.0
        %799 = vmatpush1.msra.mxu0 0.0
        %800 = vmatprep.subr.mxu0 0.0
        %801 = vmatpush1.msra.mxu0 0.0
        %802 = vmatprep.subr.mxu0 0.0
        %803 = vmatpush1.msra.mxu0 0.0
        %804 = vmatprep.subr.mxu0 0.0
        %805 = vmatpush1.msra.mxu0 0.0
        %806 = vmatprep.subr.mxu0 0.0
        %807 = vmatpush1.msra.mxu0 0.0
        %808 = vmatprep.subr.mxu0 0.0
        %809 = vmatpush1.msra.mxu0 0.0
        %810 = vmatprep.subr.mxu0 0.0
        %811 = vmatpush1.msra.mxu0 0.0
        %812 = vmatprep.subr.mxu0 0.0
        %813 = vmatpush1.msra.mxu0 0.0
        %814 = vmatprep.subr.mxu0 0.0
        %815 = vmatpush1.msra.mxu0 0.0
        %816 = vmatprep.subr.mxu0 0.0
        %817 = vmatpush1.msra.mxu0 0.0
        %818 = vmatprep.subr.mxu0 0.0
        %819 = vmatpush1.msra.mxu0 0.0
        %820 = vmatprep.subr.mxu0 0.0
        %821 = vmatpush1.msra.mxu0 0.0
        %822 = vmatprep.subr.mxu0 0.0
        %823 = vmatpush1.msra.mxu0 0.0
        %824 = vmatprep.mubr.f32.mxu0 0.0
        %825 = vmatmul.mubr.f32.gmra.mrb[0].mxu0 %v749
        %v826 = vpop.f32.mrb[0].mxu0
        %v827 = vadd.f32 %v730, %v826
        %v828 = vpop.f32.mrb[0].mxu0
        %829 = vmatprep.mubr.f32.mxu0 0.0
        %830 = vmatmul.mubr.f32.gmra.mrb[0].mxu0 %v752
        %v831 = vpop.f32.mrb[0].mxu0
        %v832 = vadd.f32 %v735, %v831
        %v833 = vpop.f32.mrb[0].mxu0
        %834 = vmatprep.mubr.f32.mxu0 0.0
        %835 = vmatmul.mubr.f32.gmra.mrb[0].mxu0 %v755
        %v836 = vpop.f32.mrb[0].mxu0
        %v837 = vadd.f32 %v740, %v836
        %v838 = vpop.f32.mrb[0].mxu0
        %839 = vmatprep.mubr.f32.mxu0 0.0
        %840 = vmatmul.mubr.f32.gmra.mrb[0].mxu0 %v758
        %v841 = vpop.f32.mrb[0].mxu0
        %v842 = vadd.f32 %v745, %v841
        %v843 = vpop.f32.mrb[0].mxu0
        %844 = vdwg.mxu0
        %849 = vrot.lane.b32.xlu0 %v827, 120
        %v850 = vpop.permute.xlu0 %849
        %851 = vrot.lane.b32.xlu0 %v832, 120
        %v852 = vpop.permute.xlu0 %851
        %853 = vrot.lane.b32.xlu0 %v837, 120
        %v854 = vpop.permute.xlu0 %853
        %855 = vrot.lane.b32.xlu0 %v842, 120
        %v856 = vpop.permute.xlu0 %855
        %v861 = vadd.f32 %v827, %v850
        %v862 = vadd.f32 %v832, %v852
        %v863 = vadd.f32 %v837, %v854
        %v864 = vadd.f32 %v842, %v856
        %v865 = vsub.f32 0.0, %v861
        %v866 = vsub.f32 0.0, %v862
        %v867 = vsub.f32 0.0, %v863
        %v868 = vsub.f32 0.0, %v864
        %v869 = vmul.f32 %v865, 1.442695
        %v870 = vpow.pop %v869
        %v871 = vmul.f32 %v866, 1.442695
        %v872 = vpow.pop %v871
        %v873 = vmul.f32 %v867, 1.442695
        %v874 = vpow.pop %v873
        %v875 = vmul.f32 %v868, 1.442695
        %v876 = vpow.pop %v875
        %v877 = vadd.f32 %v870, 1.0
        %v878 = vadd.f32 %v872, 1.0
        %v879 = vadd.f32 %v874, 1.0
        %v880 = vadd.f32 %v876, 1.0
        %v881 = vrcp.pop %v877
        %v882 = vmul.f32 1.0, %v881
        %v883 = vrcp.pop %v878
        %v884 = vmul.f32 1.0, %v883
        %v885 = vrcp.pop %v879
        %v886 = vmul.f32 1.0, %v885
        %v887 = vrcp.pop %v880
        %v888 = vmul.f32 1.0, %v887
        %890 = vset.pattern.permute.xlu0 0
        %891 = vperm.xlu0 %890, %v882
        %v892 = vpop.permute.xlu0 %891
        %895 = vset.pattern.permute.xlu0 0
        %896 = vperm.xlu0 %895, %v884
        %v897 = vpop.permute.xlu0 %896
        %900 = vset.pattern.permute.xlu0 0
        %901 = vperm.xlu0 %900, %v886
        %v902 = vpop.permute.xlu0 %901
        %905 = vset.pattern.permute.xlu0 0
        %906 = vperm.xlu0 %905, %v888
        %v907 = vpop.permute.xlu0 %906
        %v909 = vmul.f32 %v267, %v892
        %v910 = vmul.f32 %v268, %v892
        %v911 = vmul.f32 %v269, %v897
        %v912 = vmul.f32 %v270, %v897
        %v913 = vmul.f32 %v271, %v902
        %v914 = vmul.f32 %v272, %v902
        %v915 = vmul.f32 %v273, %v907
        %v916 = vmul.f32 %v274, %v907
        %917 = vst [vmem:[%s252] sm:$0xff] %v909
        %918 = vst [vmem:[%s252 + $0x8] sm:$0xff] %v910
        %919 = vst [vmem:[%s252 + $0x10] sm:$0xff] %v911
        %920 = vst [vmem:[%s252 + $0x18] sm:$0xff] %v912
        %921 = vst [vmem:[%s252 + $0x20] sm:$0xff] %v913
        %922 = vst [vmem:[%s252 + $0x28] sm:$0xff] %v914
        %923 = vst [vmem:[%s252 + $0x30] sm:$0xff] %v915
        %924 = vst [vmem:[%s252 + $0x38] sm:$0xff] %v916
        %925 = vset.pattern.permute.xlu0 1
        %926 = vperm.xlu0 %925, %v882
        %v927 = vpop.permute.xlu0 %926
        %929 = vset.pattern.permute.xlu0 1
        %930 = vperm.xlu0 %929, %v884
        %v931 = vpop.permute.xlu0 %930
        %933 = vset.pattern.permute.xlu0 1
        %934 = vperm.xlu0 %933, %v886
        %v935 = vpop.permute.xlu0 %934
        %937 = vset.pattern.permute.xlu0 1
        %938 = vperm.xlu0 %937, %v888
        %v939 = vpop.permute.xlu0 %938
        %v941 = vmul.f32 %v275, %v927
        %v942 = vmul.f32 %v276, %v927
        %v943 = vmul.f32 %v277, %v931
        %v944 = vmul.f32 %v278, %v931
        %v945 = vmul.f32 %v279, %v935
        %v946 = vmul.f32 %v280, %v935
        %v947 = vmul.f32 %v281, %v939
        %v948 = vmul.f32 %v282, %v939
        %s949 = scalar_lea.vmem %s252, 64 [#allocation5]
        %950 = vst [vmem:[%s949] sm:$0xff] %v941
        %951 = vst [vmem:[%s949 + $0x8] sm:$0xff] %v942
        %952 = vst [vmem:[%s949 + $0x10] sm:$0xff] %v943
        %953 = vst [vmem:[%s949 + $0x18] sm:$0xff] %v944
        %954 = vst [vmem:[%s949 + $0x20] sm:$0xff] %v945
        %955 = vst [vmem:[%s949 + $0x28] sm:$0xff] %v946
        %956 = vst [vmem:[%s949 + $0x30] sm:$0xff] %v947
        %957 = vst [vmem:[%s949 + $0x38] sm:$0xff] %v948
        %958 = vset.pattern.permute.xlu0 2
        %959 = vperm.xlu0 %958, %v882
        %v960 = vpop.permute.xlu0 %959
        %962 = vset.pattern.permute.xlu0 2
        %963 = vperm.xlu0 %962, %v884
        %v964 = vpop.permute.xlu0 %963
        %966 = vset.pattern.permute.xlu0 2
        %967 = vperm.xlu0 %966, %v886
        %v968 = vpop.permute.xlu0 %967
        %970 = vset.pattern.permute.xlu0 2
        %971 = vperm.xlu0 %970, %v888
        %v972 = vpop.permute.xlu0 %971
        %v974 = vmul.f32 %v283, %v960
        %v975 = vmul.f32 %v284, %v960
        %v976 = vmul.f32 %v285, %v964
        %v977 = vmul.f32 %v286, %v964
        %v978 = vmul.f32 %v287, %v968
        %v979 = vmul.f32 %v288, %v968
        %v980 = vmul.f32 %v289, %v972
        %v981 = vmul.f32 %v290, %v972
        %s982 = scalar_lea.vmem %s252, 128 [#allocation5]
        %983 = vst [vmem:[%s982] sm:$0xff] %v974
        %984 = vst [vmem:[%s982 + $0x8] sm:$0xff] %v975
        %985 = vst [vmem:[%s982 + $0x10] sm:$0xff] %v976
        %986 = vst [vmem:[%s982 + $0x18] sm:$0xff] %v977
        %987 = vst [vmem:[%s982 + $0x20] sm:$0xff] %v978
        %988 = vst [vmem:[%s982 + $0x28] sm:$0xff] %v979
        %989 = vst [vmem:[%s982 + $0x30] sm:$0xff] %v980
        %990 = vst [vmem:[%s982 + $0x38] sm:$0xff] %v981
        %991 = vset.pattern.permute.xlu0 3
        %992 = vperm.xlu0 %991, %v882
        %v993 = vpop.permute.xlu0 %992
        %995 = vset.pattern.permute.xlu0 3
        %996 = vperm.xlu0 %995, %v884
        %v997 = vpop.permute.xlu0 %996
        %999 = vset.pattern.permute.xlu0 3
        %1000 = vperm.xlu0 %999, %v886
        %v1001 = vpop.permute.xlu0 %1000
        %1003 = vset.pattern.permute.xlu0 3
        %1004 = vperm.xlu0 %1003, %v888
        %v1005 = vpop.permute.xlu0 %1004
        %v1007 = vmul.f32 %v291, %v993
        %v1008 = vmul.f32 %v292, %v993
        %v1009 = vmul.f32 %v293, %v997
        %v1010 = vmul.f32 %v294, %v997
        %v1011 = vmul.f32 %v295, %v1001
        %v1012 = vmul.f32 %v296, %v1001
        %v1013 = vmul.f32 %v297, %v1005
        %v1014 = vmul.f32 %v298, %v1005
        %s1015 = scalar_lea.vmem %s252, 192 [#allocation5]
        %1016 = vst [vmem:[%s1015] sm:$0xff] %v1007
        %1017 = vst [vmem:[%s1015 + $0x8] sm:$0xff] %v1008
        %1018 = vst [vmem:[%s1015 + $0x10] sm:$0xff] %v1009
        %1019 = vst [vmem:[%s1015 + $0x18] sm:$0xff] %v1010
        %1020 = vst [vmem:[%s1015 + $0x20] sm:$0xff] %v1011
        %1021 = vst [vmem:[%s1015 + $0x28] sm:$0xff] %v1012
        %1022 = vst [vmem:[%s1015 + $0x30] sm:$0xff] %v1013
        %1023 = vst [vmem:[%s1015 + $0x38] sm:$0xff] %v1014
        %1024 = vset.pattern.permute.xlu0 4
        %1025 = vperm.xlu0 %1024, %v882
        %v1026 = vpop.permute.xlu0 %1025
        %1028 = vset.pattern.permute.xlu0 4
        %1029 = vperm.xlu0 %1028, %v884
        %v1030 = vpop.permute.xlu0 %1029
        %1032 = vset.pattern.permute.xlu0 4
        %1033 = vperm.xlu0 %1032, %v886
        %v1034 = vpop.permute.xlu0 %1033
        %1036 = vset.pattern.permute.xlu0 4
        %1037 = vperm.xlu0 %1036, %v888
        %v1038 = vpop.permute.xlu0 %1037
        %v1040 = vmul.f32 %v299, %v1026
        %v1041 = vmul.f32 %v300, %v1026
        %v1042 = vmul.f32 %v301, %v1030
        %v1043 = vmul.f32 %v302, %v1030
        %v1044 = vmul.f32 %v303, %v1034
        %v1045 = vmul.f32 %v304, %v1034
        %v1046 = vmul.f32 %v305, %v1038
        %v1047 = vmul.f32 %v306, %v1038
        %s1048 = scalar_lea.vmem %s252, 256 [#allocation5]
        %1049 = vst [vmem:[%s1048] sm:$0xff] %v1040
        %1050 = vst [vmem:[%s1048 + $0x8] sm:$0xff] %v1041
        %1051 = vst [vmem:[%s1048 + $0x10] sm:$0xff] %v1042
        %1052 = vst [vmem:[%s1048 + $0x18] sm:$0xff] %v1043
        %1053 = vst [vmem:[%s1048 + $0x20] sm:$0xff] %v1044
        %1054 = vst [vmem:[%s1048 + $0x28] sm:$0xff] %v1045
        %1055 = vst [vmem:[%s1048 + $0x30] sm:$0xff] %v1046
        %1056 = vst [vmem:[%s1048 + $0x38] sm:$0xff] %v1047
        %1057 = vset.pattern.permute.xlu0 5
        %1058 = vperm.xlu0 %1057, %v882
        %v1059 = vpop.permute.xlu0 %1058
        %1061 = vset.pattern.permute.xlu0 5
        %1062 = vperm.xlu0 %1061, %v884
        %v1063 = vpop.permute.xlu0 %1062
        %1065 = vset.pattern.permute.xlu0 5
        %1066 = vperm.xlu0 %1065, %v886
        %v1067 = vpop.permute.xlu0 %1066
        %1069 = vset.pattern.permute.xlu0 5
        %1070 = vperm.xlu0 %1069, %v888
        %v1071 = vpop.permute.xlu0 %1070
        %v1073 = vmul.f32 %v307, %v1059
        %v1074 = vmul.f32 %v308, %v1059
        %v1075 = vmul.f32 %v309, %v1063
        %v1076 = vmul.f32 %v310, %v1063
        %v1077 = vmul.f32 %v311, %v1067
        %v1078 = vmul.f32 %v312, %v1067
        %v1079 = vmul.f32 %v313, %v1071
        %v1080 = vmul.f32 %v314, %v1071
        %s1081 = scalar_lea.vmem %s252, 320 [#allocation5]
        %1082 = vst [vmem:[%s1081] sm:$0xff] %v1073
        %1083 = vst [vmem:[%s1081 + $0x8] sm:$0xff] %v1074
        %1084 = vst [vmem:[%s1081 + $0x10] sm:$0xff] %v1075
        %1085 = vst [vmem:[%s1081 + $0x18] sm:$0xff] %v1076
        %1086 = vst [vmem:[%s1081 + $0x20] sm:$0xff] %v1077
        %1087 = vst [vmem:[%s1081 + $0x28] sm:$0xff] %v1078
        %1088 = vst [vmem:[%s1081 + $0x30] sm:$0xff] %v1079
        %1089 = vst [vmem:[%s1081 + $0x38] sm:$0xff] %v1080
        %1090 = vset.pattern.permute.xlu0 6
        %1091 = vperm.xlu0 %1090, %v882
        %v1092 = vpop.permute.xlu0 %1091
        %1094 = vset.pattern.permute.xlu0 6
        %1095 = vperm.xlu0 %1094, %v884
        %v1096 = vpop.permute.xlu0 %1095
        %1098 = vset.pattern.permute.xlu0 6
        %1099 = vperm.xlu0 %1098, %v886
        %v1100 = vpop.permute.xlu0 %1099
        %1102 = vset.pattern.permute.xlu0 6
        %1103 = vperm.xlu0 %1102, %v888
        %v1104 = vpop.permute.xlu0 %1103
        %v1106 = vmul.f32 %v315, %v1092
        %v1107 = vmul.f32 %v316, %v1092
        %v1108 = vmul.f32 %v317, %v1096
        %v1109 = vmul.f32 %v318, %v1096
        %v1110 = vmul.f32 %v319, %v1100
        %v1111 = vmul.f32 %v320, %v1100
        %v1112 = vmul.f32 %v321, %v1104
        %v1113 = vmul.f32 %v322, %v1104
        %s1114 = scalar_lea.vmem %s252, 384 [#allocation5]
        %1115 = vst [vmem:[%s1114] sm:$0xff] %v1106
        %1116 = vst [vmem:[%s1114 + $0x8] sm:$0xff] %v1107
        %1117 = vst [vmem:[%s1114 + $0x10] sm:$0xff] %v1108
        %1118 = vst [vmem:[%s1114 + $0x18] sm:$0xff] %v1109
        %1119 = vst [vmem:[%s1114 + $0x20] sm:$0xff] %v1110
        %1120 = vst [vmem:[%s1114 + $0x28] sm:$0xff] %v1111
        %1121 = vst [vmem:[%s1114 + $0x30] sm:$0xff] %v1112
        %1122 = vst [vmem:[%s1114 + $0x38] sm:$0xff] %v1113
        %1123 = vset.pattern.permute.xlu0 7
        %1124 = vperm.xlu0 %1123, %v882
        %v1125 = vpop.permute.xlu0 %1124
        %1127 = vset.pattern.permute.xlu0 7
        %1128 = vperm.xlu0 %1127, %v884
        %v1129 = vpop.permute.xlu0 %1128
        %1131 = vset.pattern.permute.xlu0 7
        %1132 = vperm.xlu0 %1131, %v886
        %v1133 = vpop.permute.xlu0 %1132
        %1135 = vset.pattern.permute.xlu0 7
        %1136 = vperm.xlu0 %1135, %v888
        %v1137 = vpop.permute.xlu0 %1136
        %v1139 = vmul.f32 %v323, %v1125
        %v1140 = vmul.f32 %v324, %v1125
        %v1141 = vmul.f32 %v325, %v1129
        %v1142 = vmul.f32 %v326, %v1129
        %v1143 = vmul.f32 %v327, %v1133
        %v1144 = vmul.f32 %v328, %v1133
        %v1145 = vmul.f32 %v329, %v1137
        %v1146 = vmul.f32 %v330, %v1137
        %s1147 = scalar_lea.vmem %s252, 448 [#allocation5]
        %1148 = vst [vmem:[%s1147] sm:$0xff] %v1139
        %1149 = vst [vmem:[%s1147 + $0x8] sm:$0xff] %v1140
        %1150 = vst [vmem:[%s1147 + $0x10] sm:$0xff] %v1141
        %1151 = vst [vmem:[%s1147 + $0x18] sm:$0xff] %v1142
        %1152 = vst [vmem:[%s1147 + $0x20] sm:$0xff] %v1143
        %1153 = vst [vmem:[%s1147 + $0x28] sm:$0xff] %v1144
        %1154 = vst [vmem:[%s1147 + $0x30] sm:$0xff] %v1145
        %1155 = vst [vmem:[%s1147 + $0x38] sm:$0xff] %v1146
        %s1156 = sand.u32 %s140, 1
        %s1157 = scalar_lea.sflag [#allocation4], %s1156
        %s1158 = sand.u32 %s140, 1
        %s1159 = smul.addr %s1158, 512
        %s1160 = scalar_lea.vmem [#allocation5], %s1159
        // Predicated region
        $region45: #{tpu_custom_call.1} parent=39 // pred_check
          %p1161 = pneg %p150
        $region46: #{tpu_custom_call.1} parent=39 // pred_check_branch
          %1163 = sbr.rel (%p1161) target = $region48
        $region47: #{tpu_custom_call.1} parent=39 // pred_region
          %s1164 = smul.u32 8, %s22
          %s1165 = ssub.s32 9, %s1164
          %p1166 = scmp.lt.s32.totalorder %s1165, 8
          %s1167 = scalar_select %p1166, %s1165, 8
          %s1168 = smul.u32 128, %s1167
          %s1169 = smul.u32 %s1168, 4
          %s1170 = smul.u32 %s1169, 2
          %s1172 = ssub.s32 8192, %s1170
          %1173 = vsyncadd %s1157, %s1172
          %p1174 = scmp.ne.s32.totalorder 0, %s1170
          %s1175 = smul.addr %s1164, 8
          %s1176 = smul.addr %s1175, 128
          %s1177 = scalar_lea.hbm %s5, %s1176
          %s1178 = smul.u32 %s1167, 4
          %s1179 = smul.u32 16, %s1178
          %s1180 = sshll.u32 %s1160, 4
          %s1181 = int_to_ptr.vmem [resolvable:$true] %s1180
          %s1182 = sshll.u32 %s1179, 4
          %1186 = dma.vmem_to_hbm [thread:$0]  (%p1174), %s1181, %s1182, %s1177, %s1157, 256, 256, 16
        $region48: #{tpu_custom_call.1} parent=39 // pred_fallthru
          _
      $region40: #{tpu_custom_call.1} parent=5 // pred_fallthru
        _
      %p1187 = scmp.le.s32.totalorder 2, %s17
      // Predicated region
      $region49: #{tpu_custom_call.1} parent=5 // pred_check
        %p1188 = pneg %p1187
      $region50: #{tpu_custom_call.1} parent=5 // pred_check_branch
        %1190 = sbr.rel (%p1188) target = $region52
      $region51: #{tpu_custom_call.1} parent=5 // pred_region
        %s1191 = ssub.s32 %s17, 2
        // Predicated region
        $region53: #{tpu_custom_call.1} parent=51 // pred_check
          %p1192 = pneg %p156
        $region54: #{tpu_custom_call.1} parent=51 // pred_check_branch
          %1194 = sbr.rel (%p1192) target = $region56
        $region55: #{tpu_custom_call.1} parent=51 // pred_region
          %s1195 = sand.u32 %s141, 1
          %s1196 = scalar_lea.sflag [#allocation4], %s1195
          %s1197 = sand.u32 %s141, 1
          %s1198 = smul.addr %s1197, 512
          %s1199 = scalar_lea.vmem [#allocation5], %s1198
          %1200 = dma.done %s1196, 8192
        $region56: #{tpu_custom_call.1} parent=51 // pred_fallthru
          _
      $region52: #{tpu_custom_call.1} parent=5 // pred_fallthru
        _
    $region6: #{tpu_custom_call.1} parent=1 // loop_footer
      %s21 = sadd.s32 1, %s17
    $region7: #{tpu_custom_call.1} parent=1 // loop_footer_branch
      %16 = sbr.rel target = $region3
    $region8: #{tpu_custom_call.1} parent=1 // loop_exit
      _
    %1201 = vsyncpa [#allocation3], 1
    %s1202 = scalar_lea.sflag [#allocation3], 1
    %1203 = vsyncpa %s1202, 1
    %1204 = vsyncpa [#allocation4], 1
    %s1205 = scalar_lea.sflag [#allocation4], 1
    %1206 = vsyncpa %s1205, 1

</llo_original>
